<compile_context>
chip_gen: v5e
topology: v5e:2x2
jax: 0.10.0
libtpu: 0.0.40
codegen_flags: <defaults>
</compile_context>

<pallas_src>
import functools

import jax
import jax.numpy as jnp
from jax.experimental import pallas as pl
from jax.experimental.pallas import tpu as pltpu


def _round_up(x, m):
    return ((x + m - 1) // m) * m


def ensemble_kernel(x_ref, w_ref, b_ref, o_ref, acc_ref, *, inv_hw, mxu_dtype):
    """One (batch-block, HW-block) grid step.

    x_ref  : [BB, G, 8, C]  spatial tile; C lane-dense, HW pre-grouped by 8 sublanes
    w_ref  : [C, Npad]      ensemble-averaged head weights (precomputed)
    b_ref  : [1, Npad]      ensemble-averaged head bias (precomputed)
    o_ref  : [BB, Npad]     ensemble-averaged logits for this batch block
    acc_ref: [BB, 8, C] f32 partial-sum pool accumulator (VMEM scratch)
    """
    ig = pl.program_id(1)

    @pl.when(ig == 0)
    def _init():
        acc_ref[...] = jnp.zeros_like(acc_ref)

    # Partial global-average-pool: sum the G sublane-groups of this HW tile.
    # axis=1 indexes whole vregs -> plain VPU adds (no cross-lane XLU work).
    acc_ref[...] += jnp.sum(x_ref[...].astype(jnp.float32), axis=1)

    @pl.when(ig == pl.num_programs(1) - 1)
    def _finalize():
        # Single 8-sublane reduce finishes the pool; C stays on lanes, which is
        # exactly the contraction layout the head matmul wants.
        pooled = jnp.sum(acc_ref[...], axis=1) * inv_hw            # [BB, C] f32
        logits = jnp.dot(pooled.astype(mxu_dtype),
                         w_ref[...].astype(mxu_dtype),
                         preferred_element_type=jnp.float32)        # [BB, Npad]
        o_ref[...] = (logits + b_ref[...]).astype(o_ref.dtype)


def precompute_ensemble_head(weights, biases):
    """Fold the ensemble mean over the (linear) per-model heads.

    weights: [M, C, N], biases: [M, N] -> (w_mean [C, Npad], b_mean [1, Npad]).
    Run ONCE at model-load time; weights are static at inference, so the mean
    and the lane padding never sit on the per-call path.
    """
    _, _, n = weights.shape
    n_pad = _round_up(n, 128)
    w_mean = jnp.mean(weights.astype(jnp.float32), axis=0)          # [C, N]
    b_mean = jnp.mean(biases.astype(jnp.float32), axis=0)           # [N]
    w_mean = jnp.pad(w_mean, ((0, 0), (0, n_pad - n)))
    b_mean = jnp.pad(b_mean, (0, n_pad - n)).reshape(1, n_pad)
    return w_mean, b_mean


def ensemble_forward(x, w_mean, b_mean, *, n_classes, hw_tile=512,
                     mxu_dtype=jnp.float32, b_block=8):
    """x: [B, C, H, W] f32/bf16 -> ensemble-averaged logits [B, n_classes]."""
    B, C, H, W = x.shape
    HW = H * W
    n_pad = w_mean.shape[1]

    # Layout plumbing (wrapper side).  At HawkEars scale, emit [B, HW, C]
    # directly from the backbone instead of transposing here.
    b_pad = _round_up(max(B, b_block), b_block)
    hw_tile = min(_round_up(hw_tile, 8), _round_up(HW, 8))
    hw_pad = _round_up(HW, hw_tile)
    g_tile = hw_tile // 8

    x_lane = jnp.transpose(x.reshape(B, C, HW), (0, 2, 1))           # [B, HW, C]
    x_lane = jnp.pad(x_lane, ((0, b_pad - B), (0, hw_pad - HW), (0, 0)))
    x_lane = x_lane.reshape(b_pad, hw_pad // 8, 8, C)                # zero-padded

    nb = b_pad // b_block      # parallel batch blocks (megacore-shardable)
    ng = hw_pad // hw_tile     # HW reduction steps (pipelined x DMA)

    kernel = functools.partial(ensemble_kernel,
                               inv_hw=1.0 / HW, mxu_dtype=mxu_dtype)

    out_padded = pl.pallas_call(
        kernel,
        out_shape=jax.ShapeDtypeStruct((b_pad, n_pad), jnp.float32),
        grid_spec=pltpu.PrefetchScalarGridSpec(
            num_scalar_prefetch=0,
            grid=(nb, ng),
            in_specs=[
                pl.BlockSpec((b_block, g_tile, 8, C),
                             lambda ib, ig: (ib, ig, 0, 0)),
                # Constant (pre-averaged) head; Pallas skips re-DMA since the
                # block index never changes.
                pl.BlockSpec((C, n_pad), lambda ib, ig: (0, 0)),
                pl.BlockSpec((1, n_pad), lambda ib, ig: (0, 0)),
            ],
            out_specs=pl.BlockSpec((b_block, n_pad), lambda ib, ig: (ib, 0)),
            scratch_shapes=[pltpu.VMEM((b_block, 8, C), jnp.float32)],
        ),
        compiler_params=pltpu.CompilerParams(
            dimension_semantics=("parallel", "arbitrary"),
            # Explicit budget; re-derive (and sweep hw_tile) for v7x's 64 MiB.
            vmem_limit_bytes=32 * 1024 * 1024,
        ),
    )(x_lane, w_mean, b_mean)

    return out_padded[:B, :n_classes]


def ensemble_reference(x, weights, biases):
    """Literal PyTorch Ensemble semantics: mean over per-model outputs."""
    B, C = x.shape[0], x.shape[1]
    pooled = jnp.mean(x.reshape(B, C, -1), axis=-1)                  # shared GAP
    outs = jnp.stack([pooled @ weights[m] + biases[m]
                      for m in range(weights.shape[0])])             # [M, B, N]
    return jnp.mean(outs, axis=0)


if __name__ == "__main__":
    key = jax.random.PRNGKey(0)
    k_x, k_w, k_b = jax.random.split(key, 3)

    B, C, H, W = 2, 4, 16, 16   # NCHW spectrogram-like input
    M = 3                       # models in the ensemble
    N = 8                       # output classes

    x = jax.random.normal(k_x, (B, C, H, W), dtype=jnp.float32)
    weights = jax.random.normal(k_w, (M, C, N), dtype=jnp.float32) * 0.1
    biases = jax.random.normal(k_b, (M, N), dtype=jnp.float32) * 0.01

    # Hoisted out of the per-call path: done once at model-load time.
    w_mean, b_mean = precompute_ensemble_head(weights, biases)

    # hw_tile=128 -> 2 pipelined reduction steps over HW at this toy size.
    out = ensemble_forward(x, w_mean, b_mean, n_classes=N, hw_tile=128)
    out = jax.block_until_ready(out)

    ref = ensemble_reference(x, weights, biases)
    assert out.shape == (B, N)
    assert jnp.allclose(out, ref, atol=1e-5, rtol=1e-5)

    # bf16-MXU-operand path (what you'd use at HawkEars scale); pool and matmul
    # accumulation stay f32, so only operand rounding widens the tolerance.
    out_bf16 = jax.block_until_ready(
        ensemble_forward(x, w_mean, b_mean, n_classes=N, hw_tile=128,
                         mxu_dtype=jnp.bfloat16))
    assert jnp.allclose(out_bf16, ref, atol=2e-2, rtol=2e-2)

    print("KERNEL_OK")
</pallas_src>

<mosaic_0001>
module attributes {stable_mosaic.version = 11 : i64} {
  func.func @ensemble_kernel(%arg0: i32, %arg1: i32, %arg2: memref<8x16x8x4xf32, #tpu.memory_space<vmem>>, %arg3: memref<4x128xf32, #tpu.memory_space<vmem>>, %arg4: memref<1x128xf32, #tpu.memory_space<vmem>>, %arg5: memref<8x128xf32, #tpu.memory_space<vmem>>, %arg6: memref<8x8x4xf32, #tpu.memory_space<vmem>>) attributes {dimension_semantics = [#tpu.dimension_semantics<parallel>, #tpu.dimension_semantics<arbitrary>], iteration_bounds = array<i64: 1, 2>, scalar_prefetch = 0 : i64, scratch_operands = 1 : i64, tpu.core_type = #tpu.core_type<tc>, window_params = [{transform_indices = @transform_0, window_bounds = array<i64: 8, 16, 8, 4>}, {pipeline_mode = #tpu.pipeline_mode<synchronous>, transform_indices = @transform_1, window_bounds = array<i64: 4, 128>}, {pipeline_mode = #tpu.pipeline_mode<synchronous>, transform_indices = @transform_2, window_bounds = array<i64: 1, 128>}, {transform_indices = @transform_3, window_bounds = array<i64: 8, 128>}]} {
    %c0_i32 = arith.constant 0 : i32
    %0 = arith.cmpi eq, %arg1, %c0_i32 : i32
    %1 = arith.extui %0 : i1 to i32
    %c0_i32_0 = arith.constant 0 : i32
    %2 = arith.cmpi ne, %1, %c0_i32_0 : i32
    scf.if %2 {
      %cst_11 = arith.constant 0.000000e+00 : f32
      %11 = vector.broadcast %cst_11 : f32 to vector<8x8x4xf32>
      %c0_12 = arith.constant 0 : index
      %c0_13 = arith.constant 0 : index
      %c0_14 = arith.constant 0 : index
      %12 = vector.load %arg6[%c0_12, %c0_13, %c0_14] : memref<8x8x4xf32, #tpu.memory_space<vmem>>, vector<8x8x4xf32>
      tpu.vector_store %arg6[%c0_12, %c0_13, %c0_14], %11 {strides = array<i32>} : memref<8x8x4xf32, #tpu.memory_space<vmem>>, vector<8x8x4xf32>,
    } else {
    }
    %c0 = arith.constant 0 : index
    %c0_1 = arith.constant 0 : index
    %c0_2 = arith.constant 0 : index
    %3 = vector.load %arg6[%c0, %c0_1, %c0_2] : memref<8x8x4xf32, #tpu.memory_space<vmem>>, vector<8x8x4xf32>
    %c0_3 = arith.constant 0 : index
    %c0_4 = arith.constant 0 : index
    %c0_5 = arith.constant 0 : index
    %c0_6 = arith.constant 0 : index
    %4 = vector.load %arg2[%c0_3, %c0_4, %c0_5, %c0_6] : memref<8x16x8x4xf32, #tpu.memory_space<vmem>>, vector<8x16x8x4xf32>
    %cst = arith.constant dense<0.000000e+00> : vector<8x8x4xf32>
    %5 = vector.multi_reduction <add>, %4, %cst [1] : vector<8x16x8x4xf32> to vector<8x8x4xf32>
    %6 = arith.addf %3, %5 : vector<8x8x4xf32>
    %c0_7 = arith.constant 0 : index
    %c0_8 = arith.constant 0 : index
    %c0_9 = arith.constant 0 : index
    %7 = vector.load %arg6[%c0_7, %c0_8, %c0_9] : memref<8x8x4xf32, #tpu.memory_space<vmem>>, vector<8x8x4xf32>
    tpu.vector_store %arg6[%c0_7, %c0_8, %c0_9], %6 {strides = array<i32>} : memref<8x8x4xf32, #tpu.memory_space<vmem>>, vector<8x8x4xf32>,
    %c1_i32 = arith.constant 1 : i32
    %8 = arith.cmpi eq, %arg1, %c1_i32 : i32
    %9 = arith.extui %8 : i1 to i32
    %c0_i32_10 = arith.constant 0 : i32
    %10 = arith.cmpi ne, %9, %c0_i32_10 : i32
    scf.if %10 {
      %c0_11 = arith.constant 0 : index
      %c0_12 = arith.constant 0 : index
      %c0_13 = arith.constant 0 : index
      %11 = vector.load %arg6[%c0_11, %c0_12, %c0_13] : memref<8x8x4xf32, #tpu.memory_space<vmem>>, vector<8x8x4xf32>
      %cst_14 = arith.constant dense<0.000000e+00> : vector<8x4xf32>
      %12 = vector.multi_reduction <add>, %11, %cst_14 [1] : vector<8x8x4xf32> to vector<8x4xf32>
      %cst_15 = arith.constant 3.906250e-03 : f32
      %13 = vector.broadcast %cst_15 : f32 to vector<8x4xf32>
      %14 = arith.mulf %12, %13 : vector<8x4xf32>
      %c0_16 = arith.constant 0 : index
      %c0_17 = arith.constant 0 : index
      %15 = vector.load %arg3[%c0_16, %c0_17] : memref<4x128xf32, #tpu.memory_space<vmem>>, vector<4x128xf32>
      %cst_18 = arith.constant dense<0.000000e+00> : vector<8x128xf32>
      %16 = tpu.matmul %14, %15, %cst_18 {dimension_numbers = #tpu.dot_dimension_numbers<[1], [0], [0], [1], [0, 0, 1, 1], [], []>} : vector<8x4xf32>, vector<4x128xf32>, vector<8x128xf32> -> vector<8x128xf32>
      %c0_19 = arith.constant 0 : index
      %c0_20 = arith.constant 0 : index
      %17 = vector.load %arg4[%c0_19, %c0_20] : memref<1x128xf32, #tpu.memory_space<vmem>>, vector<1x128xf32>
      %18 = vector.broadcast %17 : vector<1x128xf32> to vector<8x128xf32>
      %19 = arith.addf %16, %18 : vector<8x128xf32>
      %c0_21 = arith.constant 0 : index
      %c0_22 = arith.constant 0 : index
      %20 = vector.load %arg5[%c0_21, %c0_22] : memref<8x128xf32, #tpu.memory_space<vmem>>, vector<8x128xf32>
      tpu.vector_store %arg5[%c0_21, %c0_22], %19 {strides = array<i32>} : memref<8x128xf32, #tpu.memory_space<vmem>>, vector<8x128xf32>,
    } else {
    }
    return
  }
  func.func @transform_0(%arg0: i32, %arg1: i32) -> (i32, i32, i32, i32) {
    %c0_i32 = arith.constant 0 : i32
    %c0_i32_0 = arith.constant 0 : i32
    %c0_i32_1 = arith.constant 0 : i32
    return %arg0, %arg1, %c0_i32, %c0_i32_0 : i32, i32, i32, i32
  }
  func.func @transform_1(%arg0: i32, %arg1: i32) -> (i32, i32) {
    %c0_i32 = arith.constant 0 : i32
    %c0_i32_0 = arith.constant 0 : i32
    %c0_i32_1 = arith.constant 0 : i32
    return %c0_i32, %c0_i32_0 : i32, i32
  }
  func.func @transform_2(%arg0: i32, %arg1: i32) -> (i32, i32) {
    %c0_i32 = arith.constant 0 : i32
    %c0_i32_0 = arith.constant 0 : i32
    %c0_i32_1 = arith.constant 0 : i32
    return %c0_i32, %c0_i32_0 : i32, i32
  }
  func.func @transform_3(%arg0: i32, %arg1: i32) -> (i32, i32) {
    %c0_i32 = arith.constant 0 : i32
    %c0_i32_0 = arith.constant 0 : i32
    return %arg0, %c0_i32 : i32, i32
  }
}

</mosaic_0001>

<llo_original>
// kernel: tpu_custom_call.1
$region0: #{tpu_custom_call.1}
  #allocation0 [shape = 'u32[]', space=smem, size = 0x4, offset = 0x4, fixed_abs, tag = 'smem constant byte address 0x4 - core index']
  #allocation1 [shape = 'u32[72,128]{1,0:T(1,128)}', space=vmem, size = 0x9000, scoped, tag = 'internal scratch']
  #allocation2 [shape = 'f32[8,8,4]{2,1,0:T(8,128)}', space=vmem, size = 0x8000, scoped, tag = 'scratch operand']
  %s0 = inlined_call_operand.vmem [shape: f32[8,32,8,4], index: 0, kind: input, shape index: {}]
  %s1 = inlined_call_operand.vmem [shape: f32[4,128], index: 1, kind: input, shape index: {}]
  %s2 = inlined_call_operand.vmem [shape: f32[1,128], index: 2, kind: input, shape index: {}]
  %s3 = inlined_call_operand.hbm [shape: f32[8,128], index: 3, kind: output, shape index: {}]
  %s4 = sld [smem:[#allocation0]]
  $region91: #{tpu_custom_call.1} parent=0
    _
  %s6 = ssub.s32 1, %s4
  %s7 = scalar_select 0, %s6, %s4
  $region1: #{tpu_custom_call.1} parent=0
    #allocation3 [shape = 'u8[1048576]{0}', space=vmem, size = 0x100000, scoped, tag = 'input window, operand 0']
    #allocation4 [shape = 'u8[4096]{0}', space=vmem, size = 0x1000, scoped, tag = 'output window, operand 0, single buffered']
    #allocation5 [shape = 's32[2]{0}', space=sflag, size = 0x8, scoped, tag = 'scoped memory for tpu_custom_call.1']
    %8 = vsyncpa [#allocation5], 0
    loop: start=0, step=1, limit=4
    $region2: #{tpu_custom_call.1} parent=1 // loop_pre_header
      _
    $region3: #{tpu_custom_call.1} parent=1 // loop_header
      %s10 = sphi 0, %s14
      %p11 = scmp.ge.s32.totalorder %s10, 4
      %s17 = sphi 0, %s29
      %s18 = sphi 0, %s25
      %s19 = sphi 0, %s17
      %s20 = sphi 0, %s18
      %s21 = sphi 0, %s19
      %s22 = sphi 0, %s20
      %s34 = sphi 0, %s36
      %s37 = sphi 0, %s34
      %s38 = sphi 0, %s37
      %s54 = sphi 0, %s38
      %s58 = sphi 0, %s58
      %s60 = sphi 0, %s58
      %s61 = sphi 0, %s60
      %s75 = sphi 0, %s61
      %s79 = sphi 0, %s79
      %s81 = sphi 0, %s79
      %s82 = sphi 0, %s81
      %s96 = sphi 0, %s82
      %s102 = sphi 0, %s104
      %s105 = sphi 0, %s102
      %s106 = sphi 0, %s105
      %s122 = sphi 0, %s106
    $region4: #{tpu_custom_call.1} parent=1 // loop_header_branch
      %13 = sbr.rel (%p11) target = $region8
    $region5: #{tpu_custom_call.1} parent=1 // loop_body
      %s15 = ssub.s32 %s10, 1
      %s16 = ssub.s32 %s10, 2
      %s23 = sadd.s32 1, %s18
      %p24 = scmp.ge.s32.totalorder %s23, 2
      %s25 = scalar_select %p24, 0, %s23
      %s26 = sadd.s32 1, %s17
      %s27 = scalar_select %p24, %s26, %s17
      %p28 = scmp.ge.s32.totalorder %s27, 1
      %s29 = scalar_select %p28, 0, %s27
      %s30 = ssub.s32 %s17, %s29
      %s31 = ssub.s32 %s18, %s25
      %s32 = sor.u32 %s30, %s31
      %p33 = scmp.eq.s32.totalorder %s32, 0
      %s35 = sadd.s32 %s34, 1
      %s36 = scalar_select %p33, %s34, %s35
      %p39 = pneg %p33
      %p40 = scmp.eq.s32.totalorder %s10, 1
      %p41 = por %p39, %p40
      %p42 = scmp.ne.s32.totalorder %s34, %s37
      %p43 = scmp.eq.s32.totalorder %s10, 0
      %p44 = por %p42, %p43
      %p45 = scmp.ne.s32.totalorder %s34, %s37
      %p46 = scmp.eq.s32.totalorder %s15, 1
      %p47 = por %p45, %p46
      %p48 = scmp.ne.s32.totalorder %s37, %s38
      %p49 = scmp.eq.s32.totalorder %s15, 0
      %p50 = por %p48, %p49
      %p51 = scmp.ne.s32.totalorder %s37, %s38
      %p52 = scmp.eq.s32.totalorder %s16, 1
      %p53 = por %p51, %p52
      %p55 = scmp.ne.s32.totalorder %s38, %s54
      %p56 = scmp.eq.s32.totalorder %s16, 0
      %p57 = por %p55, %p56
      %s59 = sadd.s32 %s58, 1
      %p62 = scmp.eq.s32.totalorder %s10, 1
      %p63 = scmp.ne.s32.totalorder %s58, %s60
      %p64 = scmp.eq.s32.totalorder %s10, 0
      %p65 = por %p63, %p64
      %p66 = scmp.ne.s32.totalorder %s58, %s60
      %p67 = scmp.eq.s32.totalorder %s15, 1
      %p68 = por %p66, %p67
      %p69 = scmp.ne.s32.totalorder %s60, %s61
      %p70 = scmp.eq.s32.totalorder %s15, 0
      %p71 = por %p69, %p70
      %p72 = scmp.ne.s32.totalorder %s60, %s61
      %p73 = scmp.eq.s32.totalorder %s16, 1
      %p74 = por %p72, %p73
      %p76 = scmp.ne.s32.totalorder %s61, %s75
      %p77 = scmp.eq.s32.totalorder %s16, 0
      %p78 = por %p76, %p77
      %s80 = sadd.s32 %s79, 1
      %p83 = scmp.eq.s32.totalorder %s10, 1
      %p84 = scmp.ne.s32.totalorder %s79, %s81
      %p85 = scmp.eq.s32.totalorder %s10, 0
      %p86 = por %p84, %p85
      %p87 = scmp.ne.s32.totalorder %s79, %s81
      %p88 = scmp.eq.s32.totalorder %s15, 1
      %p89 = por %p87, %p88
      %p90 = scmp.ne.s32.totalorder %s81, %s82
      %p91 = scmp.eq.s32.totalorder %s15, 0
      %p92 = por %p90, %p91
      %p93 = scmp.ne.s32.totalorder %s81, %s82
      %p94 = scmp.eq.s32.totalorder %s16, 1
      %p95 = por %p93, %p94
      %p97 = scmp.ne.s32.totalorder %s82, %s96
      %p98 = scmp.eq.s32.totalorder %s16, 0
      %p99 = por %p97, %p98
      %s100 = ssub.s32 %s17, %s29
      %p101 = scmp.eq.s32.totalorder %s100, 0
      %s103 = sadd.s32 %s102, 1
      %s104 = scalar_select %p101, %s102, %s103
      %p107 = pneg %p101
      %p108 = scmp.eq.s32.totalorder %s10, 1
      %p109 = por %p107, %p108
      %p110 = scmp.ne.s32.totalorder %s102, %s105
      %p111 = scmp.eq.s32.totalorder %s10, 0
      %p112 = por %p110, %p111
      %p113 = scmp.ne.s32.totalorder %s102, %s105
      %p114 = scmp.eq.s32.totalorder %s15, 1
      %p115 = por %p113, %p114
      %p116 = scmp.ne.s32.totalorder %s105, %s106
      %p117 = scmp.eq.s32.totalorder %s15, 0
      %p118 = por %p116, %p117
      %p119 = scmp.ne.s32.totalorder %s105, %s106
      %p120 = scmp.eq.s32.totalorder %s16, 1
      %p121 = por %p119, %p120
      %p123 = scmp.ne.s32.totalorder %s106, %s122
      %p124 = scmp.eq.s32.totalorder %s16, 0
      %p125 = por %p123, %p124
      %p126 = scmp.le.s32.totalorder 1, %s10
      %p127 = scmp.lt.s32.totalorder %s10, 3
      %p128 = pnand %p126, %p127
      %p129 = pneg %p128
      // Predicated region
      $region9: #{tpu_custom_call.1} parent=5 // pred_check
        _
      $region10: #{tpu_custom_call.1} parent=5 // pred_check_branch
        %131 = sbr.rel (%p128) target = $region12
      $region11: #{tpu_custom_call.1} parent=5 // pred_region
        %s132 = ssub.s32 %s10, 1
        // Predicated region
        $region13: #{tpu_custom_call.1} parent=11 // pred_check
          %p133 = pneg %p71
        $region14: #{tpu_custom_call.1} parent=11 // pred_check_branch
          %135 = sbr.rel (%p133) target = $region16
        $region15: #{tpu_custom_call.1} parent=11 // pred_region
          _
        $region16: #{tpu_custom_call.1} parent=11 // pred_fallthru
          _
        // Predicated region
        $region17: #{tpu_custom_call.1} parent=11 // pred_check
          %p136 = pneg %p92
        $region18: #{tpu_custom_call.1} parent=11 // pred_check_branch
          %138 = sbr.rel (%p136) target = $region20
        $region19: #{tpu_custom_call.1} parent=11 // pred_region
          _
        $region20: #{tpu_custom_call.1} parent=11 // pred_fallthru
          _
      $region12: #{tpu_custom_call.1} parent=5 // pred_fallthru
        _
      %p139 = scmp.lt.s32.totalorder %s10, 2
      // Predicated region
      $region21: #{tpu_custom_call.1} parent=5 // pred_check
        %p140 = pneg %p139
      $region22: #{tpu_custom_call.1} parent=5 // pred_check_branch
        %142 = sbr.rel (%p140) target = $region24
      $region23: #{tpu_custom_call.1} parent=5 // pred_region
        // Predicated region
        $region25: #{tpu_custom_call.1} parent=23 // pred_check
          %p143 = pneg %p44
        $region26: #{tpu_custom_call.1} parent=23 // pred_check_branch
          %145 = sbr.rel (%p143) target = $region28
        $region27: #{tpu_custom_call.1} parent=23 // pred_region
          %s146 = sand.u32 %s34, 1
          %s147 = sand.u32 %s34, 1
          %s148 = smul.addr %s147, 1024
          %s149 = scalar_lea.vmem [#allocation3], %s148
          %s150 = smul.u32 8, %s17
          %s151 = smul.u32 16, %s18
          %s152 = smul.addr %s150, 32
          %s153 = sadd.s32 %s151, %s152
          %s154 = smul.addr %s153, 8
          %s155 = scalar_lea.vmem %s0, %s154
          // Predicated region
          $region29: #{tpu_custom_call.1} parent=27 // pred_check
            _
          $region30: #{tpu_custom_call.1} parent=27 // pred_check_branch
            %157 = sbr.rel (0) target = $region32
          $region31: #{tpu_custom_call.1} parent=27 // pred_region
            // Predicated region
            $region33: #{tpu_custom_call.1} parent=31 // pred_check
              _
            $region34: #{tpu_custom_call.1} parent=31 // pred_check_branch
              %159 = sbr.rel (0) target = $region36
            $region35: #{tpu_custom_call.1} parent=31 // pred_region
              // Predicated region
              $region48: #{tpu_custom_call.1} parent=35 // pred_check
                _
              $region49: #{tpu_custom_call.1} parent=35 // pred_check_branch
                %429 = sbr.rel (0) target = $region51
              $region50: #{tpu_custom_call.1} parent=35 // pred_region
                loop: start=0, step=1, limit=1
                $region52: #{tpu_custom_call.1} parent=50 // loop_pre_header
                  _
                $region53: #{tpu_custom_call.1} parent=50 // loop_header
                  %s431 = sphi 0, %s435
                  %p432 = scmp.ge.s32.totalorder %s431, 1
                  %s436 = sphi %s155, %s155
                  %s437 = sphi %s149, %s149
                $region54: #{tpu_custom_call.1} parent=50 // loop_header_branch
                  %434 = sbr.rel (%p432) target = $region58
                $region55: #{tpu_custom_call.1} parent=50 // loop_body
                  %v438 = vld [vmem:[%s436] sm:$0xff]
                  %439 = vst [vmem:[%s437] sm:$0xff] %v438
                  %v440 = vld [vmem:[%s436 + $0x8] sm:$0xff]
                  %441 = vst [vmem:[%s437 + $0x8] sm:$0xff] %v440
                  %v442 = vld [vmem:[%s436 + $0x10] sm:$0xff]
                  %443 = vst [vmem:[%s437 + $0x10] sm:$0xff] %v442
                  %v444 = vld [vmem:[%s436 + $0x18] sm:$0xff]
                  %445 = vst [vmem:[%s437 + $0x18] sm:$0xff] %v444
                  %v446 = vld [vmem:[%s436 + $0x20] sm:$0xff]
                  %447 = vst [vmem:[%s437 + $0x20] sm:$0xff] %v446
                  %v448 = vld [vmem:[%s436 + $0x28] sm:$0xff]
                  %449 = vst [vmem:[%s437 + $0x28] sm:$0xff] %v448
                  %v450 = vld [vmem:[%s436 + $0x30] sm:$0xff]
                  %451 = vst [vmem:[%s437 + $0x30] sm:$0xff] %v450
                  %v452 = vld [vmem:[%s436 + $0x38] sm:$0xff]
                  %453 = vst [vmem:[%s437 + $0x38] sm:$0xff] %v452
                  %v454 = vld [vmem:[%s436 + $0x40] sm:$0xff]
                  %455 = vst [vmem:[%s437 + $0x40] sm:$0xff] %v454
                  %v456 = vld [vmem:[%s436 + $0x48] sm:$0xff]
                  %457 = vst [vmem:[%s437 + $0x48] sm:$0xff] %v456
                  %v458 = vld [vmem:[%s436 + $0x50] sm:$0xff]
                  %459 = vst [vmem:[%s437 + $0x50] sm:$0xff] %v458
                  %v460 = vld [vmem:[%s436 + $0x58] sm:$0xff]
                  %461 = vst [vmem:[%s437 + $0x58] sm:$0xff] %v460
                  %v462 = vld [vmem:[%s436 + $0x60] sm:$0xff]
                  %463 = vst [vmem:[%s437 + $0x60] sm:$0xff] %v462
                  %v464 = vld [vmem:[%s436 + $0x68] sm:$0xff]
                  %465 = vst [vmem:[%s437 + $0x68] sm:$0xff] %v464
                  %v466 = vld [vmem:[%s436 + $0x70] sm:$0xff]
                  %467 = vst [vmem:[%s437 + $0x70] sm:$0xff] %v466
                  %v468 = vld [vmem:[%s436 + $0x78] sm:$0xff]
                  %469 = vst [vmem:[%s437 + $0x78] sm:$0xff] %v468
                  %v470 = vld [vmem:[%s436 + $0x100] sm:$0xff]
                  %471 = vst [vmem:[%s437 + $0x80] sm:$0xff] %v470
                  %v472 = vld [vmem:[%s436 + $0x108] sm:$0xff]
                  %473 = vst [vmem:[%s437 + $0x88] sm:$0xff] %v472
                  %v474 = vld [vmem:[%s436 + $0x110] sm:$0xff]
                  %475 = vst [vmem:[%s437 + $0x90] sm:$0xff] %v474
                  %v476 = vld [vmem:[%s436 + $0x118] sm:$0xff]
                  %477 = vst [vmem:[%s437 + $0x98] sm:$0xff] %v476
                  %v478 = vld [vmem:[%s436 + $0x120] sm:$0xff]
                  %479 = vst [vmem:[%s437 + $0xa0] sm:$0xff] %v478
                  %v480 = vld [vmem:[%s436 + $0x128] sm:$0xff]
                  %481 = vst [vmem:[%s437 + $0xa8] sm:$0xff] %v480
                  %v482 = vld [vmem:[%s436 + $0x130] sm:$0xff]
                  %483 = vst [vmem:[%s437 + $0xb0] sm:$0xff] %v482
                  %v484 = vld [vmem:[%s436 + $0x138] sm:$0xff]
                  %485 = vst [vmem:[%s437 + $0xb8] sm:$0xff] %v484
                  %v486 = vld [vmem:[%s436 + $0x140] sm:$0xff]
                  %487 = vst [vmem:[%s437 + $0xc0] sm:$0xff] %v486
                  %v488 = vld [vmem:[%s436 + $0x148] sm:$0xff]
                  %489 = vst [vmem:[%s437 + $0xc8] sm:$0xff] %v488
                  %v490 = vld [vmem:[%s436 + $0x150] sm:$0xff]
                  %491 = vst [vmem:[%s437 + $0xd0] sm:$0xff] %v490
                  %v492 = vld [vmem:[%s436 + $0x158] sm:$0xff]
                  %493 = vst [vmem:[%s437 + $0xd8] sm:$0xff] %v492
                  %v494 = vld [vmem:[%s436 + $0x160] sm:$0xff]
                  %495 = vst [vmem:[%s437 + $0xe0] sm:$0xff] %v494
                  %v496 = vld [vmem:[%s436 + $0x168] sm:$0xff]
                  %497 = vst [vmem:[%s437 + $0xe8] sm:$0xff] %v496
                  %v498 = vld [vmem:[%s436 + $0x170] sm:$0xff]
                  %499 = vst [vmem:[%s437 + $0xf0] sm:$0xff] %v498
                  %v500 = vld [vmem:[%s436 + $0x178] sm:$0xff]
                  %501 = vst [vmem:[%s437 + $0xf8] sm:$0xff] %v500
                  %v502 = vld [vmem:[%s436 + $0x200] sm:$0xff]
                  %503 = vst [vmem:[%s437 + $0x100] sm:$0xff] %v502
                  %v504 = vld [vmem:[%s436 + $0x208] sm:$0xff]
                  %505 = vst [vmem:[%s437 + $0x108] sm:$0xff] %v504
                  %v506 = vld [vmem:[%s436 + $0x210] sm:$0xff]
                  %507 = vst [vmem:[%s437 + $0x110] sm:$0xff] %v506
                  %v508 = vld [vmem:[%s436 + $0x218] sm:$0xff]
                  %509 = vst [vmem:[%s437 + $0x118] sm:$0xff] %v508
                  %v510 = vld [vmem:[%s436 + $0x220] sm:$0xff]
                  %511 = vst [vmem:[%s437 + $0x120] sm:$0xff] %v510
                  %v512 = vld [vmem:[%s436 + $0x228] sm:$0xff]
                  %513 = vst [vmem:[%s437 + $0x128] sm:$0xff] %v512
                  %v514 = vld [vmem:[%s436 + $0x230] sm:$0xff]
                  %515 = vst [vmem:[%s437 + $0x130] sm:$0xff] %v514
                  %v516 = vld [vmem:[%s436 + $0x238] sm:$0xff]
                  %517 = vst [vmem:[%s437 + $0x138] sm:$0xff] %v516
                  %v518 = vld [vmem:[%s436 + $0x240] sm:$0xff]
                  %519 = vst [vmem:[%s437 + $0x140] sm:$0xff] %v518
                  %v520 = vld [vmem:[%s436 + $0x248] sm:$0xff]
                  %521 = vst [vmem:[%s437 + $0x148] sm:$0xff] %v520
                  %v522 = vld [vmem:[%s436 + $0x250] sm:$0xff]
                  %523 = vst [vmem:[%s437 + $0x150] sm:$0xff] %v522
                  %v524 = vld [vmem:[%s436 + $0x258] sm:$0xff]
                  %525 = vst [vmem:[%s437 + $0x158] sm:$0xff] %v524
                  %v526 = vld [vmem:[%s436 + $0x260] sm:$0xff]
                  %527 = vst [vmem:[%s437 + $0x160] sm:$0xff] %v526
                  %v528 = vld [vmem:[%s436 + $0x268] sm:$0xff]
                  %529 = vst [vmem:[%s437 + $0x168] sm:$0xff] %v528
                  %v530 = vld [vmem:[%s436 + $0x270] sm:$0xff]
                  %531 = vst [vmem:[%s437 + $0x170] sm:$0xff] %v530
                  %v532 = vld [vmem:[%s436 + $0x278] sm:$0xff]
                  %533 = vst [vmem:[%s437 + $0x178] sm:$0xff] %v532
                  %v534 = vld [vmem:[%s436 + $0x300] sm:$0xff]
                  %535 = vst [vmem:[%s437 + $0x180] sm:$0xff] %v534
                  %v536 = vld [vmem:[%s436 + $0x308] sm:$0xff]
                  %537 = vst [vmem:[%s437 + $0x188] sm:$0xff] %v536
                  %v538 = vld [vmem:[%s436 + $0x310] sm:$0xff]
                  %539 = vst [vmem:[%s437 + $0x190] sm:$0xff] %v538
                  %v540 = vld [vmem:[%s436 + $0x318] sm:$0xff]
                  %541 = vst [vmem:[%s437 + $0x198] sm:$0xff] %v540
                  %v542 = vld [vmem:[%s436 + $0x320] sm:$0xff]
                  %543 = vst [vmem:[%s437 + $0x1a0] sm:$0xff] %v542
                  %v544 = vld [vmem:[%s436 + $0x328] sm:$0xff]
                  %545 = vst [vmem:[%s437 + $0x1a8] sm:$0xff] %v544
                  %v546 = vld [vmem:[%s436 + $0x330] sm:$0xff]
                  %547 = vst [vmem:[%s437 + $0x1b0] sm:$0xff] %v546
                  %v548 = vld [vmem:[%s436 + $0x338] sm:$0xff]
                  %549 = vst [vmem:[%s437 + $0x1b8] sm:$0xff] %v548
                  %v550 = vld [vmem:[%s436 + $0x340] sm:$0xff]
                  %551 = vst [vmem:[%s437 + $0x1c0] sm:$0xff] %v550
                  %v552 = vld [vmem:[%s436 + $0x348] sm:$0xff]
                  %553 = vst [vmem:[%s437 + $0x1c8] sm:$0xff] %v552
                  %v554 = vld [vmem:[%s436 + $0x350] sm:$0xff]
                  %555 = vst [vmem:[%s437 + $0x1d0] sm:$0xff] %v554
                  %v556 = vld [vmem:[%s436 + $0x358] sm:$0xff]
                  %557 = vst [vmem:[%s437 + $0x1d8] sm:$0xff] %v556
                  %v558 = vld [vmem:[%s436 + $0x360] sm:$0xff]
                  %559 = vst [vmem:[%s437 + $0x1e0] sm:$0xff] %v558
                  %v560 = vld [vmem:[%s436 + $0x368] sm:$0xff]
                  %561 = vst [vmem:[%s437 + $0x1e8] sm:$0xff] %v560
                  %v562 = vld [vmem:[%s436 + $0x370] sm:$0xff]
                  %563 = vst [vmem:[%s437 + $0x1f0] sm:$0xff] %v562
                  %v564 = vld [vmem:[%s436 + $0x378] sm:$0xff]
                  %565 = vst [vmem:[%s437 + $0x1f8] sm:$0xff] %v564
                  %v566 = vld [vmem:[%s436 + $0x400] sm:$0xff]
                  %567 = vst [vmem:[%s437 + $0x200] sm:$0xff] %v566
                  %v568 = vld [vmem:[%s436 + $0x408] sm:$0xff]
                  %569 = vst [vmem:[%s437 + $0x208] sm:$0xff] %v568
                  %v570 = vld [vmem:[%s436 + $0x410] sm:$0xff]
                  %571 = vst [vmem:[%s437 + $0x210] sm:$0xff] %v570
                  %v572 = vld [vmem:[%s436 + $0x418] sm:$0xff]
                  %573 = vst [vmem:[%s437 + $0x218] sm:$0xff] %v572
                  %v574 = vld [vmem:[%s436 + $0x420] sm:$0xff]
                  %575 = vst [vmem:[%s437 + $0x220] sm:$0xff] %v574
                  %v576 = vld [vmem:[%s436 + $0x428] sm:$0xff]
                  %577 = vst [vmem:[%s437 + $0x228] sm:$0xff] %v576
                  %v578 = vld [vmem:[%s436 + $0x430] sm:$0xff]
                  %579 = vst [vmem:[%s437 + $0x230] sm:$0xff] %v578
                  %v580 = vld [vmem:[%s436 + $0x438] sm:$0xff]
                  %581 = vst [vmem:[%s437 + $0x238] sm:$0xff] %v580
                  %v582 = vld [vmem:[%s436 + $0x440] sm:$0xff]
                  %583 = vst [vmem:[%s437 + $0x240] sm:$0xff] %v582
                  %v584 = vld [vmem:[%s436 + $0x448] sm:$0xff]
                  %585 = vst [vmem:[%s437 + $0x248] sm:$0xff] %v584
                  %v586 = vld [vmem:[%s436 + $0x450] sm:$0xff]
                  %587 = vst [vmem:[%s437 + $0x250] sm:$0xff] %v586
                  %v588 = vld [vmem:[%s436 + $0x458] sm:$0xff]
                  %589 = vst [vmem:[%s437 + $0x258] sm:$0xff] %v588
                  %v590 = vld [vmem:[%s436 + $0x460] sm:$0xff]
                  %591 = vst [vmem:[%s437 + $0x260] sm:$0xff] %v590
                  %v592 = vld [vmem:[%s436 + $0x468] sm:$0xff]
                  %593 = vst [vmem:[%s437 + $0x268] sm:$0xff] %v592
                  %v594 = vld [vmem:[%s436 + $0x470] sm:$0xff]
                  %595 = vst [vmem:[%s437 + $0x270] sm:$0xff] %v594
                  %v596 = vld [vmem:[%s436 + $0x478] sm:$0xff]
                  %597 = vst [vmem:[%s437 + $0x278] sm:$0xff] %v596
                  %v598 = vld [vmem:[%s436 + $0x500] sm:$0xff]
                  %599 = vst [vmem:[%s437 + $0x280] sm:$0xff] %v598
                  %v600 = vld [vmem:[%s436 + $0x508] sm:$0xff]
                  %601 = vst [vmem:[%s437 + $0x288] sm:$0xff] %v600
                  %v602 = vld [vmem:[%s436 + $0x510] sm:$0xff]
                  %603 = vst [vmem:[%s437 + $0x290] sm:$0xff] %v602
                  %v604 = vld [vmem:[%s436 + $0x518] sm:$0xff]
                  %605 = vst [vmem:[%s437 + $0x298] sm:$0xff] %v604
                  %v606 = vld [vmem:[%s436 + $0x520] sm:$0xff]
                  %607 = vst [vmem:[%s437 + $0x2a0] sm:$0xff] %v606
                  %v608 = vld [vmem:[%s436 + $0x528] sm:$0xff]
                  %609 = vst [vmem:[%s437 + $0x2a8] sm:$0xff] %v608
                  %v610 = vld [vmem:[%s436 + $0x530] sm:$0xff]
                  %611 = vst [vmem:[%s437 + $0x2b0] sm:$0xff] %v610
                  %v612 = vld [vmem:[%s436 + $0x538] sm:$0xff]
                  %613 = vst [vmem:[%s437 + $0x2b8] sm:$0xff] %v612
                  %v614 = vld [vmem:[%s436 + $0x540] sm:$0xff]
                  %615 = vst [vmem:[%s437 + $0x2c0] sm:$0xff] %v614
                  %v616 = vld [vmem:[%s436 + $0x548] sm:$0xff]
                  %617 = vst [vmem:[%s437 + $0x2c8] sm:$0xff] %v616
                  %v618 = vld [vmem:[%s436 + $0x550] sm:$0xff]
                  %619 = vst [vmem:[%s437 + $0x2d0] sm:$0xff] %v618
                  %v620 = vld [vmem:[%s436 + $0x558] sm:$0xff]
                  %621 = vst [vmem:[%s437 + $0x2d8] sm:$0xff] %v620
                  %v622 = vld [vmem:[%s436 + $0x560] sm:$0xff]
                  %623 = vst [vmem:[%s437 + $0x2e0] sm:$0xff] %v622
                  %v624 = vld [vmem:[%s436 + $0x568] sm:$0xff]
                  %625 = vst [vmem:[%s437 + $0x2e8] sm:$0xff] %v624
                  %v626 = vld [vmem:[%s436 + $0x570] sm:$0xff]
                  %627 = vst [vmem:[%s437 + $0x2f0] sm:$0xff] %v626
                  %v628 = vld [vmem:[%s436 + $0x578] sm:$0xff]
                  %629 = vst [vmem:[%s437 + $0x2f8] sm:$0xff] %v628
                  %v630 = vld [vmem:[%s436 + $0x600] sm:$0xff]
                  %631 = vst [vmem:[%s437 + $0x300] sm:$0xff] %v630
                  %v632 = vld [vmem:[%s436 + $0x608] sm:$0xff]
                  %633 = vst [vmem:[%s437 + $0x308] sm:$0xff] %v632
                  %v634 = vld [vmem:[%s436 + $0x610] sm:$0xff]
                  %635 = vst [vmem:[%s437 + $0x310] sm:$0xff] %v634
                  %v636 = vld [vmem:[%s436 + $0x618] sm:$0xff]
                  %637 = vst [vmem:[%s437 + $0x318] sm:$0xff] %v636
                  %v638 = vld [vmem:[%s436 + $0x620] sm:$0xff]
                  %639 = vst [vmem:[%s437 + $0x320] sm:$0xff] %v638
                  %v640 = vld [vmem:[%s436 + $0x628] sm:$0xff]
                  %641 = vst [vmem:[%s437 + $0x328] sm:$0xff] %v640
                  %v642 = vld [vmem:[%s436 + $0x630] sm:$0xff]
                  %643 = vst [vmem:[%s437 + $0x330] sm:$0xff] %v642
                  %v644 = vld [vmem:[%s436 + $0x638] sm:$0xff]
                  %645 = vst [vmem:[%s437 + $0x338] sm:$0xff] %v644
                  %v646 = vld [vmem:[%s436 + $0x640] sm:$0xff]
                  %647 = vst [vmem:[%s437 + $0x340] sm:$0xff] %v646
                  %v648 = vld [vmem:[%s436 + $0x648] sm:$0xff]
                  %649 = vst [vmem:[%s437 + $0x348] sm:$0xff] %v648
                  %v650 = vld [vmem:[%s436 + $0x650] sm:$0xff]
                  %651 = vst [vmem:[%s437 + $0x350] sm:$0xff] %v650
                  %v652 = vld [vmem:[%s436 + $0x658] sm:$0xff]
                  %653 = vst [vmem:[%s437 + $0x358] sm:$0xff] %v652
                  %v654 = vld [vmem:[%s436 + $0x660] sm:$0xff]
                  %655 = vst [vmem:[%s437 + $0x360] sm:$0xff] %v654
                  %v656 = vld [vmem:[%s436 + $0x668] sm:$0xff]
                  %657 = vst [vmem:[%s437 + $0x368] sm:$0xff] %v656
                  %v658 = vld [vmem:[%s436 + $0x670] sm:$0xff]
                  %659 = vst [vmem:[%s437 + $0x370] sm:$0xff] %v658
                  %v660 = vld [vmem:[%s436 + $0x678] sm:$0xff]
                  %661 = vst [vmem:[%s437 + $0x378] sm:$0xff] %v660
                  %v662 = vld [vmem:[%s436 + $0x700] sm:$0xff]
                  %663 = vst [vmem:[%s437 + $0x380] sm:$0xff] %v662
                  %v664 = vld [vmem:[%s436 + $0x708] sm:$0xff]
                  %665 = vst [vmem:[%s437 + $0x388] sm:$0xff] %v664
                  %v666 = vld [vmem:[%s436 + $0x710] sm:$0xff]
                  %667 = vst [vmem:[%s437 + $0x390] sm:$0xff] %v666
                  %v668 = vld [vmem:[%s436 + $0x718] sm:$0xff]
                  %669 = vst [vmem:[%s437 + $0x398] sm:$0xff] %v668
                  %v670 = vld [vmem:[%s436 + $0x720] sm:$0xff]
                  %671 = vst [vmem:[%s437 + $0x3a0] sm:$0xff] %v670
                  %v672 = vld [vmem:[%s436 + $0x728] sm:$0xff]
                  %673 = vst [vmem:[%s437 + $0x3a8] sm:$0xff] %v672
                  %v674 = vld [vmem:[%s436 + $0x730] sm:$0xff]
                  %675 = vst [vmem:[%s437 + $0x3b0] sm:$0xff] %v674
                  %v676 = vld [vmem:[%s436 + $0x738] sm:$0xff]
                  %677 = vst [vmem:[%s437 + $0x3b8] sm:$0xff] %v676
                  %v678 = vld [vmem:[%s436 + $0x740] sm:$0xff]
                  %679 = vst [vmem:[%s437 + $0x3c0] sm:$0xff] %v678
                  %v680 = vld [vmem:[%s436 + $0x748] sm:$0xff]
                  %681 = vst [vmem:[%s437 + $0x3c8] sm:$0xff] %v680
                  %v682 = vld [vmem:[%s436 + $0x750] sm:$0xff]
                  %683 = vst [vmem:[%s437 + $0x3d0] sm:$0xff] %v682
                  %v684 = vld [vmem:[%s436 + $0x758] sm:$0xff]
                  %685 = vst [vmem:[%s437 + $0x3d8] sm:$0xff] %v684
                  %v686 = vld [vmem:[%s436 + $0x760] sm:$0xff]
                  %687 = vst [vmem:[%s437 + $0x3e0] sm:$0xff] %v686
                  %v688 = vld [vmem:[%s436 + $0x768] sm:$0xff]
                  %689 = vst [vmem:[%s437 + $0x3e8] sm:$0xff] %v688
                  %v690 = vld [vmem:[%s436 + $0x770] sm:$0xff]
                  %691 = vst [vmem:[%s437 + $0x3f0] sm:$0xff] %v690
                  %v692 = vld [vmem:[%s436 + $0x778] sm:$0xff]
                  %693 = vst [vmem:[%s437 + $0x3f8] sm:$0xff] %v692
                $region56: #{tpu_custom_call.1} parent=50 // loop_footer
                  %s435 = sadd.s32 1, %s431
                $region57: #{tpu_custom_call.1} parent=50 // loop_footer_branch
                  %430 = sbr.rel target = $region53
                $region58: #{tpu_custom_call.1} parent=50 // loop_exit
                  _
              $region51: #{tpu_custom_call.1} parent=35 // pred_fallthru
                _
              // Predicated region
              $region59: #{tpu_custom_call.1} parent=35 // pred_check
                _
              $region60: #{tpu_custom_call.1} parent=35 // pred_check_branch
                %695 = sbr.rel target = $region62
              $region61: #{tpu_custom_call.1} parent=35 // pred_region
                _
              $region62: #{tpu_custom_call.1} parent=35 // pred_fallthru
                _
            $region36: #{tpu_custom_call.1} parent=31 // pred_fallthru
              _
            // Predicated region
            $region37: #{tpu_custom_call.1} parent=31 // pred_check
              _
            $region38: #{tpu_custom_call.1} parent=31 // pred_check_branch
              %161 = sbr.rel target = $region40
            $region39: #{tpu_custom_call.1} parent=31 // pred_region
              %s163 = ssub.s32 256, 1
              loop: start=0, step=1, limit=1
              $region41: #{tpu_custom_call.1} parent=39 // loop_pre_header
                _
              $region42: #{tpu_custom_call.1} parent=39 // loop_header
                %s165 = sphi 0, %s169
                %p166 = scmp.ge.s32.totalorder %s165, 1
                %s170 = sphi %s155, %s155
                %s171 = sphi %s149, %s149
              $region43: #{tpu_custom_call.1} parent=39 // loop_header_branch
                %168 = sbr.rel (%p166) target = $region47
              $region44: #{tpu_custom_call.1} parent=39 // loop_body
                %v172 = vld [vmem:[%s170] sm:%s163]
                %173 = vst [vmem:[%s171] sm:%s163] %v172
                %v174 = vld [vmem:[%s170 + $0x8] sm:%s163]
                %175 = vst [vmem:[%s171 + $0x8] sm:%s163] %v174
                %v176 = vld [vmem:[%s170 + $0x10] sm:%s163]
                %177 = vst [vmem:[%s171 + $0x10] sm:%s163] %v176
                %v178 = vld [vmem:[%s170 + $0x18] sm:%s163]
                %179 = vst [vmem:[%s171 + $0x18] sm:%s163] %v178
                %v180 = vld [vmem:[%s170 + $0x20] sm:%s163]
                %181 = vst [vmem:[%s171 + $0x20] sm:%s163] %v180
                %v182 = vld [vmem:[%s170 + $0x28] sm:%s163]
                %183 = vst [vmem:[%s171 + $0x28] sm:%s163] %v182
                %v184 = vld [vmem:[%s170 + $0x30] sm:%s163]
                %185 = vst [vmem:[%s171 + $0x30] sm:%s163] %v184
                %v186 = vld [vmem:[%s170 + $0x38] sm:%s163]
                %187 = vst [vmem:[%s171 + $0x38] sm:%s163] %v186
                %v188 = vld [vmem:[%s170 + $0x40] sm:%s163]
                %189 = vst [vmem:[%s171 + $0x40] sm:%s163] %v188
                %v190 = vld [vmem:[%s170 + $0x48] sm:%s163]
                %191 = vst [vmem:[%s171 + $0x48] sm:%s163] %v190
                %v192 = vld [vmem:[%s170 + $0x50] sm:%s163]
                %193 = vst [vmem:[%s171 + $0x50] sm:%s163] %v192
                %v194 = vld [vmem:[%s170 + $0x58] sm:%s163]
                %195 = vst [vmem:[%s171 + $0x58] sm:%s163] %v194
                %v196 = vld [vmem:[%s170 + $0x60] sm:%s163]
                %197 = vst [vmem:[%s171 + $0x60] sm:%s163] %v196
                %v198 = vld [vmem:[%s170 + $0x68] sm:%s163]
                %199 = vst [vmem:[%s171 + $0x68] sm:%s163] %v198
                %v200 = vld [vmem:[%s170 + $0x70] sm:%s163]
                %201 = vst [vmem:[%s171 + $0x70] sm:%s163] %v200
                %v202 = vld [vmem:[%s170 + $0x78] sm:%s163]
                %203 = vst [vmem:[%s171 + $0x78] sm:%s163] %v202
                %v204 = vld [vmem:[%s170 + $0x100] sm:%s163]
                %205 = vst [vmem:[%s171 + $0x80] sm:%s163] %v204
                %v206 = vld [vmem:[%s170 + $0x108] sm:%s163]
                %207 = vst [vmem:[%s171 + $0x88] sm:%s163] %v206
                %v208 = vld [vmem:[%s170 + $0x110] sm:%s163]
                %209 = vst [vmem:[%s171 + $0x90] sm:%s163] %v208
                %v210 = vld [vmem:[%s170 + $0x118] sm:%s163]
                %211 = vst [vmem:[%s171 + $0x98] sm:%s163] %v210
                %v212 = vld [vmem:[%s170 + $0x120] sm:%s163]
                %213 = vst [vmem:[%s171 + $0xa0] sm:%s163] %v212
                %v214 = vld [vmem:[%s170 + $0x128] sm:%s163]
                %215 = vst [vmem:[%s171 + $0xa8] sm:%s163] %v214
                %v216 = vld [vmem:[%s170 + $0x130] sm:%s163]
                %217 = vst [vmem:[%s171 + $0xb0] sm:%s163] %v216
                %v218 = vld [vmem:[%s170 + $0x138] sm:%s163]
                %219 = vst [vmem:[%s171 + $0xb8] sm:%s163] %v218
                %v220 = vld [vmem:[%s170 + $0x140] sm:%s163]
                %221 = vst [vmem:[%s171 + $0xc0] sm:%s163] %v220
                %v222 = vld [vmem:[%s170 + $0x148] sm:%s163]
                %223 = vst [vmem:[%s171 + $0xc8] sm:%s163] %v222
                %v224 = vld [vmem:[%s170 + $0x150] sm:%s163]
                %225 = vst [vmem:[%s171 + $0xd0] sm:%s163] %v224
                %v226 = vld [vmem:[%s170 + $0x158] sm:%s163]
                %227 = vst [vmem:[%s171 + $0xd8] sm:%s163] %v226
                %v228 = vld [vmem:[%s170 + $0x160] sm:%s163]
                %229 = vst [vmem:[%s171 + $0xe0] sm:%s163] %v228
                %v230 = vld [vmem:[%s170 + $0x168] sm:%s163]
                %231 = vst [vmem:[%s171 + $0xe8] sm:%s163] %v230
                %v232 = vld [vmem:[%s170 + $0x170] sm:%s163]
                %233 = vst [vmem:[%s171 + $0xf0] sm:%s163] %v232
                %v234 = vld [vmem:[%s170 + $0x178] sm:%s163]
                %235 = vst [vmem:[%s171 + $0xf8] sm:%s163] %v234
                %v236 = vld [vmem:[%s170 + $0x200] sm:%s163]
                %237 = vst [vmem:[%s171 + $0x100] sm:%s163] %v236
                %v238 = vld [vmem:[%s170 + $0x208] sm:%s163]
                %239 = vst [vmem:[%s171 + $0x108] sm:%s163] %v238
                %v240 = vld [vmem:[%s170 + $0x210] sm:%s163]
                %241 = vst [vmem:[%s171 + $0x110] sm:%s163] %v240
                %v242 = vld [vmem:[%s170 + $0x218] sm:%s163]
                %243 = vst [vmem:[%s171 + $0x118] sm:%s163] %v242
                %v244 = vld [vmem:[%s170 + $0x220] sm:%s163]
                %245 = vst [vmem:[%s171 + $0x120] sm:%s163] %v244
                %v246 = vld [vmem:[%s170 + $0x228] sm:%s163]
                %247 = vst [vmem:[%s171 + $0x128] sm:%s163] %v246
                %v248 = vld [vmem:[%s170 + $0x230] sm:%s163]
                %249 = vst [vmem:[%s171 + $0x130] sm:%s163] %v248
                %v250 = vld [vmem:[%s170 + $0x238] sm:%s163]
                %251 = vst [vmem:[%s171 + $0x138] sm:%s163] %v250
                %v252 = vld [vmem:[%s170 + $0x240] sm:%s163]
                %253 = vst [vmem:[%s171 + $0x140] sm:%s163] %v252
                %v254 = vld [vmem:[%s170 + $0x248] sm:%s163]
                %255 = vst [vmem:[%s171 + $0x148] sm:%s163] %v254
                %v256 = vld [vmem:[%s170 + $0x250] sm:%s163]
                %257 = vst [vmem:[%s171 + $0x150] sm:%s163] %v256
                %v258 = vld [vmem:[%s170 + $0x258] sm:%s163]
                %259 = vst [vmem:[%s171 + $0x158] sm:%s163] %v258
                %v260 = vld [vmem:[%s170 + $0x260] sm:%s163]
                %261 = vst [vmem:[%s171 + $0x160] sm:%s163] %v260
                %v262 = vld [vmem:[%s170 + $0x268] sm:%s163]
                %263 = vst [vmem:[%s171 + $0x168] sm:%s163] %v262
                %v264 = vld [vmem:[%s170 + $0x270] sm:%s163]
                %265 = vst [vmem:[%s171 + $0x170] sm:%s163] %v264
                %v266 = vld [vmem:[%s170 + $0x278] sm:%s163]
                %267 = vst [vmem:[%s171 + $0x178] sm:%s163] %v266
                %v268 = vld [vmem:[%s170 + $0x300] sm:%s163]
                %269 = vst [vmem:[%s171 + $0x180] sm:%s163] %v268
                %v270 = vld [vmem:[%s170 + $0x308] sm:%s163]
                %271 = vst [vmem:[%s171 + $0x188] sm:%s163] %v270
                %v272 = vld [vmem:[%s170 + $0x310] sm:%s163]
                %273 = vst [vmem:[%s171 + $0x190] sm:%s163] %v272
                %v274 = vld [vmem:[%s170 + $0x318] sm:%s163]
                %275 = vst [vmem:[%s171 + $0x198] sm:%s163] %v274
                %v276 = vld [vmem:[%s170 + $0x320] sm:%s163]
                %277 = vst [vmem:[%s171 + $0x1a0] sm:%s163] %v276
                %v278 = vld [vmem:[%s170 + $0x328] sm:%s163]
                %279 = vst [vmem:[%s171 + $0x1a8] sm:%s163] %v278
                %v280 = vld [vmem:[%s170 + $0x330] sm:%s163]
                %281 = vst [vmem:[%s171 + $0x1b0] sm:%s163] %v280
                %v282 = vld [vmem:[%s170 + $0x338] sm:%s163]
                %283 = vst [vmem:[%s171 + $0x1b8] sm:%s163] %v282
                %v284 = vld [vmem:[%s170 + $0x340] sm:%s163]
                %285 = vst [vmem:[%s171 + $0x1c0] sm:%s163] %v284
                %v286 = vld [vmem:[%s170 + $0x348] sm:%s163]
                %287 = vst [vmem:[%s171 + $0x1c8] sm:%s163] %v286
                %v288 = vld [vmem:[%s170 + $0x350] sm:%s163]
                %289 = vst [vmem:[%s171 + $0x1d0] sm:%s163] %v288
                %v290 = vld [vmem:[%s170 + $0x358] sm:%s163]
                %291 = vst [vmem:[%s171 + $0x1d8] sm:%s163] %v290
                %v292 = vld [vmem:[%s170 + $0x360] sm:%s163]
                %293 = vst [vmem:[%s171 + $0x1e0] sm:%s163] %v292
                %v294 = vld [vmem:[%s170 + $0x368] sm:%s163]
                %295 = vst [vmem:[%s171 + $0x1e8] sm:%s163] %v294
                %v296 = vld [vmem:[%s170 + $0x370] sm:%s163]
                %297 = vst [vmem:[%s171 + $0x1f0] sm:%s163] %v296
                %v298 = vld [vmem:[%s170 + $0x378] sm:%s163]
                %299 = vst [vmem:[%s171 + $0x1f8] sm:%s163] %v298
                %v300 = vld [vmem:[%s170 + $0x400] sm:%s163]
                %301 = vst [vmem:[%s171 + $0x200] sm:%s163] %v300
                %v302 = vld [vmem:[%s170 + $0x408] sm:%s163]
                %303 = vst [vmem:[%s171 + $0x208] sm:%s163] %v302
                %v304 = vld [vmem:[%s170 + $0x410] sm:%s163]
                %305 = vst [vmem:[%s171 + $0x210] sm:%s163] %v304
                %v306 = vld [vmem:[%s170 + $0x418] sm:%s163]
                %307 = vst [vmem:[%s171 + $0x218] sm:%s163] %v306
                %v308 = vld [vmem:[%s170 + $0x420] sm:%s163]
                %309 = vst [vmem:[%s171 + $0x220] sm:%s163] %v308
                %v310 = vld [vmem:[%s170 + $0x428] sm:%s163]
                %311 = vst [vmem:[%s171 + $0x228] sm:%s163] %v310
                %v312 = vld [vmem:[%s170 + $0x430] sm:%s163]
                %313 = vst [vmem:[%s171 + $0x230] sm:%s163] %v312
                %v314 = vld [vmem:[%s170 + $0x438] sm:%s163]
                %315 = vst [vmem:[%s171 + $0x238] sm:%s163] %v314
                %v316 = vld [vmem:[%s170 + $0x440] sm:%s163]
                %317 = vst [vmem:[%s171 + $0x240] sm:%s163] %v316
                %v318 = vld [vmem:[%s170 + $0x448] sm:%s163]
                %319 = vst [vmem:[%s171 + $0x248] sm:%s163] %v318
                %v320 = vld [vmem:[%s170 + $0x450] sm:%s163]
                %321 = vst [vmem:[%s171 + $0x250] sm:%s163] %v320
                %v322 = vld [vmem:[%s170 + $0x458] sm:%s163]
                %323 = vst [vmem:[%s171 + $0x258] sm:%s163] %v322
                %v324 = vld [vmem:[%s170 + $0x460] sm:%s163]
                %325 = vst [vmem:[%s171 + $0x260] sm:%s163] %v324
                %v326 = vld [vmem:[%s170 + $0x468] sm:%s163]
                %327 = vst [vmem:[%s171 + $0x268] sm:%s163] %v326
                %v328 = vld [vmem:[%s170 + $0x470] sm:%s163]
                %329 = vst [vmem:[%s171 + $0x270] sm:%s163] %v328
                %v330 = vld [vmem:[%s170 + $0x478] sm:%s163]
                %331 = vst [vmem:[%s171 + $0x278] sm:%s163] %v330
                %v332 = vld [vmem:[%s170 + $0x500] sm:%s163]
                %333 = vst [vmem:[%s171 + $0x280] sm:%s163] %v332
                %v334 = vld [vmem:[%s170 + $0x508] sm:%s163]
                %335 = vst [vmem:[%s171 + $0x288] sm:%s163] %v334
                %v336 = vld [vmem:[%s170 + $0x510] sm:%s163]
                %337 = vst [vmem:[%s171 + $0x290] sm:%s163] %v336
                %v338 = vld [vmem:[%s170 + $0x518] sm:%s163]
                %339 = vst [vmem:[%s171 + $0x298] sm:%s163] %v338
                %v340 = vld [vmem:[%s170 + $0x520] sm:%s163]
                %341 = vst [vmem:[%s171 + $0x2a0] sm:%s163] %v340
                %v342 = vld [vmem:[%s170 + $0x528] sm:%s163]
                %343 = vst [vmem:[%s171 + $0x2a8] sm:%s163] %v342
                %v344 = vld [vmem:[%s170 + $0x530] sm:%s163]
                %345 = vst [vmem:[%s171 + $0x2b0] sm:%s163] %v344
                %v346 = vld [vmem:[%s170 + $0x538] sm:%s163]
                %347 = vst [vmem:[%s171 + $0x2b8] sm:%s163] %v346
                %v348 = vld [vmem:[%s170 + $0x540] sm:%s163]
                %349 = vst [vmem:[%s171 + $0x2c0] sm:%s163] %v348
                %v350 = vld [vmem:[%s170 + $0x548] sm:%s163]
                %351 = vst [vmem:[%s171 + $0x2c8] sm:%s163] %v350
                %v352 = vld [vmem:[%s170 + $0x550] sm:%s163]
                %353 = vst [vmem:[%s171 + $0x2d0] sm:%s163] %v352
                %v354 = vld [vmem:[%s170 + $0x558] sm:%s163]
                %355 = vst [vmem:[%s171 + $0x2d8] sm:%s163] %v354
                %v356 = vld [vmem:[%s170 + $0x560] sm:%s163]
                %357 = vst [vmem:[%s171 + $0x2e0] sm:%s163] %v356
                %v358 = vld [vmem:[%s170 + $0x568] sm:%s163]
                %359 = vst [vmem:[%s171 + $0x2e8] sm:%s163] %v358
                %v360 = vld [vmem:[%s170 + $0x570] sm:%s163]
                %361 = vst [vmem:[%s171 + $0x2f0] sm:%s163] %v360
                %v362 = vld [vmem:[%s170 + $0x578] sm:%s163]
                %363 = vst [vmem:[%s171 + $0x2f8] sm:%s163] %v362
                %v364 = vld [vmem:[%s170 + $0x600] sm:%s163]
                %365 = vst [vmem:[%s171 + $0x300] sm:%s163] %v364
                %v366 = vld [vmem:[%s170 + $0x608] sm:%s163]
                %367 = vst [vmem:[%s171 + $0x308] sm:%s163] %v366
                %v368 = vld [vmem:[%s170 + $0x610] sm:%s163]
                %369 = vst [vmem:[%s171 + $0x310] sm:%s163] %v368
                %v370 = vld [vmem:[%s170 + $0x618] sm:%s163]
                %371 = vst [vmem:[%s171 + $0x318] sm:%s163] %v370
                %v372 = vld [vmem:[%s170 + $0x620] sm:%s163]
                %373 = vst [vmem:[%s171 + $0x320] sm:%s163] %v372
                %v374 = vld [vmem:[%s170 + $0x628] sm:%s163]
                %375 = vst [vmem:[%s171 + $0x328] sm:%s163] %v374
                %v376 = vld [vmem:[%s170 + $0x630] sm:%s163]
                %377 = vst [vmem:[%s171 + $0x330] sm:%s163] %v376
                %v378 = vld [vmem:[%s170 + $0x638] sm:%s163]
                %379 = vst [vmem:[%s171 + $0x338] sm:%s163] %v378
                %v380 = vld [vmem:[%s170 + $0x640] sm:%s163]
                %381 = vst [vmem:[%s171 + $0x340] sm:%s163] %v380
                %v382 = vld [vmem:[%s170 + $0x648] sm:%s163]
                %383 = vst [vmem:[%s171 + $0x348] sm:%s163] %v382
                %v384 = vld [vmem:[%s170 + $0x650] sm:%s163]
                %385 = vst [vmem:[%s171 + $0x350] sm:%s163] %v384
                %v386 = vld [vmem:[%s170 + $0x658] sm:%s163]
                %387 = vst [vmem:[%s171 + $0x358] sm:%s163] %v386
                %v388 = vld [vmem:[%s170 + $0x660] sm:%s163]
                %389 = vst [vmem:[%s171 + $0x360] sm:%s163] %v388
                %v390 = vld [vmem:[%s170 + $0x668] sm:%s163]
                %391 = vst [vmem:[%s171 + $0x368] sm:%s163] %v390
                %v392 = vld [vmem:[%s170 + $0x670] sm:%s163]
                %393 = vst [vmem:[%s171 + $0x370] sm:%s163] %v392
                %v394 = vld [vmem:[%s170 + $0x678] sm:%s163]
                %395 = vst [vmem:[%s171 + $0x378] sm:%s163] %v394
                %v396 = vld [vmem:[%s170 + $0x700] sm:%s163]
                %397 = vst [vmem:[%s171 + $0x380] sm:%s163] %v396
                %v398 = vld [vmem:[%s170 + $0x708] sm:%s163]
                %399 = vst [vmem:[%s171 + $0x388] sm:%s163] %v398
                %v400 = vld [vmem:[%s170 + $0x710] sm:%s163]
                %401 = vst [vmem:[%s171 + $0x390] sm:%s163] %v400
                %v402 = vld [vmem:[%s170 + $0x718] sm:%s163]
                %403 = vst [vmem:[%s171 + $0x398] sm:%s163] %v402
                %v404 = vld [vmem:[%s170 + $0x720] sm:%s163]
                %405 = vst [vmem:[%s171 + $0x3a0] sm:%s163] %v404
                %v406 = vld [vmem:[%s170 + $0x728] sm:%s163]
                %407 = vst [vmem:[%s171 + $0x3a8] sm:%s163] %v406
                %v408 = vld [vmem:[%s170 + $0x730] sm:%s163]
                %409 = vst [vmem:[%s171 + $0x3b0] sm:%s163] %v408
                %v410 = vld [vmem:[%s170 + $0x738] sm:%s163]
                %411 = vst [vmem:[%s171 + $0x3b8] sm:%s163] %v410
                %v412 = vld [vmem:[%s170 + $0x740] sm:%s163]
                %413 = vst [vmem:[%s171 + $0x3c0] sm:%s163] %v412
                %v414 = vld [vmem:[%s170 + $0x748] sm:%s163]
                %415 = vst [vmem:[%s171 + $0x3c8] sm:%s163] %v414
                %v416 = vld [vmem:[%s170 + $0x750] sm:%s163]
                %417 = vst [vmem:[%s171 + $0x3d0] sm:%s163] %v416
                %v418 = vld [vmem:[%s170 + $0x758] sm:%s163]
                %419 = vst [vmem:[%s171 + $0x3d8] sm:%s163] %v418
                %v420 = vld [vmem:[%s170 + $0x760] sm:%s163]
                %421 = vst [vmem:[%s171 + $0x3e0] sm:%s163] %v420
                %v422 = vld [vmem:[%s170 + $0x768] sm:%s163]
                %423 = vst [vmem:[%s171 + $0x3e8] sm:%s163] %v422
                %v424 = vld [vmem:[%s170 + $0x770] sm:%s163]
                %425 = vst [vmem:[%s171 + $0x3f0] sm:%s163] %v424
                %v426 = vld [vmem:[%s170 + $0x778] sm:%s163]
                %427 = vst [vmem:[%s171 + $0x3f8] sm:%s163] %v426
              $region45: #{tpu_custom_call.1} parent=39 // loop_footer
                %s169 = sadd.s32 1, %s165
              $region46: #{tpu_custom_call.1} parent=39 // loop_footer_branch
                %164 = sbr.rel target = $region42
              $region47: #{tpu_custom_call.1} parent=39 // loop_exit
                _
            $region40: #{tpu_custom_call.1} parent=31 // pred_fallthru
              _
          $region32: #{tpu_custom_call.1} parent=27 // pred_fallthru
            _
          %696 = vnop
        $region28: #{tpu_custom_call.1} parent=23 // pred_fallthru
          _
      $region24: #{tpu_custom_call.1} parent=5 // pred_fallthru
        _
      %p697 = scmp.le.s32.totalorder 1, %s10
      %p698 = scmp.lt.s32.totalorder %s10, 3
      %p699 = pnand %p697, %p698
      %p700 = pneg %p699
      // Predicated region
      $region63: #{tpu_custom_call.1} parent=5 // pred_check
        _
      $region64: #{tpu_custom_call.1} parent=5 // pred_check_branch
        %702 = sbr.rel (%p699) target = $region66
      $region65: #{tpu_custom_call.1} parent=5 // pred_region
        %s703 = ssub.s32 %s10, 1
        %s704 = sand.u32 %s37, 1
        %s705 = sand.u32 %s37, 1
        %s706 = smul.addr %s705, 1024
        %s707 = scalar_lea.vmem [#allocation3], %s706
        // Predicated region
        $region67: #{tpu_custom_call.1} parent=65 // pred_check
          %p708 = pneg %p50
        $region68: #{tpu_custom_call.1} parent=65 // pred_check_branch
          %710 = sbr.rel (%p708) target = $region70
        $region69: #{tpu_custom_call.1} parent=65 // pred_region
          _
        $region70: #{tpu_custom_call.1} parent=65 // pred_fallthru
          _
        %s711 = sand.u32 %s37, 1
        %s712 = sand.u32 %s37, 1
        %s713 = smul.addr %s712, 1024
        %s714 = scalar_lea.vmem [#allocation3], %s713
        %p715 = pneg %p50
        %p716 = pneg %p47
        %p717 = pneg %p71
        %p718 = pneg %p68
        %p719 = pneg %p92
        %p720 = pneg %p89
        %p721 = pneg %p118
        %p722 = pneg %p115
        %s723 = smul.u32 8, %s19
        %s724 = smul.u32 16, %s20
        %p725 = scmp.eq.s32.totalorder %s20, 0
        // Predicated region
        $region71: #{tpu_custom_call.1} parent=65 // pred_check
          %p726 = pneg %p725
        $region72: #{tpu_custom_call.1} parent=65 // pred_check_branch
          %728 = sbr.rel (%p726) target = $region74
        $region73: #{tpu_custom_call.1} parent=65 // pred_region
          %vm729 = vcmask 31744
          %730 = vst.msk [vmem:[#allocation2] sm:$0xff] %vm729, 0.0
          %731 = vst.msk [vmem:[#allocation2 + $0x8] sm:$0xff] %vm729, 0.0
          %732 = vst.msk [vmem:[#allocation2 + $0x10] sm:$0xff] %vm729, 0.0
          %733 = vst.msk [vmem:[#allocation2 + $0x18] sm:$0xff] %vm729, 0.0
          %734 = vst.msk [vmem:[#allocation2 + $0x20] sm:$0xff] %vm729, 0.0
          %735 = vst.msk [vmem:[#allocation2 + $0x28] sm:$0xff] %vm729, 0.0
          %736 = vst.msk [vmem:[#allocation2 + $0x30] sm:$0xff] %vm729, 0.0
          %737 = vst.msk [vmem:[#allocation2 + $0x38] sm:$0xff] %vm729, 0.0
        $region74: #{tpu_custom_call.1} parent=65 // pred_fallthru
          _
        %v738 = vld [vmem:[#allocation2] sm:$0xff]
        %v739 = vld [vmem:[#allocation2 + $0x8] sm:$0xff]
        %v740 = vld [vmem:[#allocation2 + $0x10] sm:$0xff]
        %v741 = vld [vmem:[#allocation2 + $0x18] sm:$0xff]
        %v742 = vld [vmem:[#allocation2 + $0x20] sm:$0xff]
        %v743 = vld [vmem:[#allocation2 + $0x28] sm:$0xff]
        %v744 = vld [vmem:[#allocation2 + $0x30] sm:$0xff]
        %v745 = vld [vmem:[#allocation2 + $0x38] sm:$0xff]
        %v746 = vld [vmem:[%s707] sm:$0xff]
        %v747 = vld [vmem:[%s707 + $0x8] sm:$0xff]
        %v748 = vld [vmem:[%s707 + $0x10] sm:$0xff]
        %v749 = vld [vmem:[%s707 + $0x18] sm:$0xff]
        %v750 = vld [vmem:[%s707 + $0x20] sm:$0xff]
        %v751 = vld [vmem:[%s707 + $0x28] sm:$0xff]
        %v752 = vld [vmem:[%s707 + $0x30] sm:$0xff]
        %v753 = vld [vmem:[%s707 + $0x38] sm:$0xff]
        %v754 = vld [vmem:[%s707 + $0x40] sm:$0xff]
        %v755 = vld [vmem:[%s707 + $0x48] sm:$0xff]
        %v756 = vld [vmem:[%s707 + $0x50] sm:$0xff]
        %v757 = vld [vmem:[%s707 + $0x58] sm:$0xff]
        %v758 = vld [vmem:[%s707 + $0x60] sm:$0xff]
        %v759 = vld [vmem:[%s707 + $0x68] sm:$0xff]
        %v760 = vld [vmem:[%s707 + $0x70] sm:$0xff]
        %v761 = vld [vmem:[%s707 + $0x78] sm:$0xff]
        %v762 = vld [vmem:[%s707 + $0x80] sm:$0xff]
        %v763 = vld [vmem:[%s707 + $0x88] sm:$0xff]
        %v764 = vld [vmem:[%s707 + $0x90] sm:$0xff]
        %v765 = vld [vmem:[%s707 + $0x98] sm:$0xff]
        %v766 = vld [vmem:[%s707 + $0xa0] sm:$0xff]
        %v767 = vld [vmem:[%s707 + $0xa8] sm:$0xff]
        %v768 = vld [vmem:[%s707 + $0xb0] sm:$0xff]
        %v769 = vld [vmem:[%s707 + $0xb8] sm:$0xff]
        %v770 = vld [vmem:[%s707 + $0xc0] sm:$0xff]
        %v771 = vld [vmem:[%s707 + $0xc8] sm:$0xff]
        %v772 = vld [vmem:[%s707 + $0xd0] sm:$0xff]
        %v773 = vld [vmem:[%s707 + $0xd8] sm:$0xff]
        %v774 = vld [vmem:[%s707 + $0xe0] sm:$0xff]
        %v775 = vld [vmem:[%s707 + $0xe8] sm:$0xff]
        %v776 = vld [vmem:[%s707 + $0xf0] sm:$0xff]
        %v777 = vld [vmem:[%s707 + $0xf8] sm:$0xff]
        %v778 = vld [vmem:[%s707 + $0x100] sm:$0xff]
        %v779 = vld [vmem:[%s707 + $0x108] sm:$0xff]
        %v780 = vld [vmem:[%s707 + $0x110] sm:$0xff]
        %v781 = vld [vmem:[%s707 + $0x118] sm:$0xff]
        %v782 = vld [vmem:[%s707 + $0x120] sm:$0xff]
        %v783 = vld [vmem:[%s707 + $0x128] sm:$0xff]
        %v784 = vld [vmem:[%s707 + $0x130] sm:$0xff]
        %v785 = vld [vmem:[%s707 + $0x138] sm:$0xff]
        %v786 = vld [vmem:[%s707 + $0x140] sm:$0xff]
        %v787 = vld [vmem:[%s707 + $0x148] sm:$0xff]
        %v788 = vld [vmem:[%s707 + $0x150] sm:$0xff]
        %v789 = vld [vmem:[%s707 + $0x158] sm:$0xff]
        %v790 = vld [vmem:[%s707 + $0x160] sm:$0xff]
        %v791 = vld [vmem:[%s707 + $0x168] sm:$0xff]
        %v792 = vld [vmem:[%s707 + $0x170] sm:$0xff]
        %v793 = vld [vmem:[%s707 + $0x178] sm:$0xff]
        %v794 = vld [vmem:[%s707 + $0x180] sm:$0xff]
        %v795 = vld [vmem:[%s707 + $0x188] sm:$0xff]
        %v796 = vld [vmem:[%s707 + $0x190] sm:$0xff]
        %v797 = vld [vmem:[%s707 + $0x198] sm:$0xff]
        %v798 = vld [vmem:[%s707 + $0x1a0] sm:$0xff]
        %v799 = vld [vmem:[%s707 + $0x1a8] sm:$0xff]
        %v800 = vld [vmem:[%s707 + $0x1b0] sm:$0xff]
        %v801 = vld [vmem:[%s707 + $0x1b8] sm:$0xff]
        %v802 = vld [vmem:[%s707 + $0x1c0] sm:$0xff]
        %v803 = vld [vmem:[%s707 + $0x1c8] sm:$0xff]
        %v804 = vld [vmem:[%s707 + $0x1d0] sm:$0xff]
        %v805 = vld [vmem:[%s707 + $0x1d8] sm:$0xff]
        %v806 = vld [vmem:[%s707 + $0x1e0] sm:$0xff]
        %v807 = vld [vmem:[%s707 + $0x1e8] sm:$0xff]
        %v808 = vld [vmem:[%s707 + $0x1f0] sm:$0xff]
        %v809 = vld [vmem:[%s707 + $0x1f8] sm:$0xff]
        %v810 = vld [vmem:[%s707 + $0x200] sm:$0xff]
        %v811 = vld [vmem:[%s707 + $0x208] sm:$0xff]
        %v812 = vld [vmem:[%s707 + $0x210] sm:$0xff]
        %v813 = vld [vmem:[%s707 + $0x218] sm:$0xff]
        %v814 = vld [vmem:[%s707 + $0x220] sm:$0xff]
        %v815 = vld [vmem:[%s707 + $0x228] sm:$0xff]
        %v816 = vld [vmem:[%s707 + $0x230] sm:$0xff]
        %v817 = vld [vmem:[%s707 + $0x238] sm:$0xff]
        %v818 = vld [vmem:[%s707 + $0x240] sm:$0xff]
        %v819 = vld [vmem:[%s707 + $0x248] sm:$0xff]
        %v820 = vld [vmem:[%s707 + $0x250] sm:$0xff]
        %v821 = vld [vmem:[%s707 + $0x258] sm:$0xff]
        %v822 = vld [vmem:[%s707 + $0x260] sm:$0xff]
        %v823 = vld [vmem:[%s707 + $0x268] sm:$0xff]
        %v824 = vld [vmem:[%s707 + $0x270] sm:$0xff]
        %v825 = vld [vmem:[%s707 + $0x278] sm:$0xff]
        %v826 = vld [vmem:[%s707 + $0x280] sm:$0xff]
        %v827 = vld [vmem:[%s707 + $0x288] sm:$0xff]
        %v828 = vld [vmem:[%s707 + $0x290] sm:$0xff]
        %v829 = vld [vmem:[%s707 + $0x298] sm:$0xff]
        %v830 = vld [vmem:[%s707 + $0x2a0] sm:$0xff]
        %v831 = vld [vmem:[%s707 + $0x2a8] sm:$0xff]
        %v832 = vld [vmem:[%s707 + $0x2b0] sm:$0xff]
        %v833 = vld [vmem:[%s707 + $0x2b8] sm:$0xff]
        %v834 = vld [vmem:[%s707 + $0x2c0] sm:$0xff]
        %v835 = vld [vmem:[%s707 + $0x2c8] sm:$0xff]
        %v836 = vld [vmem:[%s707 + $0x2d0] sm:$0xff]
        %v837 = vld [vmem:[%s707 + $0x2d8] sm:$0xff]
        %v838 = vld [vmem:[%s707 + $0x2e0] sm:$0xff]
        %v839 = vld [vmem:[%s707 + $0x2e8] sm:$0xff]
        %v840 = vld [vmem:[%s707 + $0x2f0] sm:$0xff]
        %v841 = vld [vmem:[%s707 + $0x2f8] sm:$0xff]
        %v842 = vld [vmem:[%s707 + $0x300] sm:$0xff]
        %v843 = vld [vmem:[%s707 + $0x308] sm:$0xff]
        %v844 = vld [vmem:[%s707 + $0x310] sm:$0xff]
        %v845 = vld [vmem:[%s707 + $0x318] sm:$0xff]
        %v846 = vld [vmem:[%s707 + $0x320] sm:$0xff]
        %v847 = vld [vmem:[%s707 + $0x328] sm:$0xff]
        %v848 = vld [vmem:[%s707 + $0x330] sm:$0xff]
        %v849 = vld [vmem:[%s707 + $0x338] sm:$0xff]
        %v850 = vld [vmem:[%s707 + $0x340] sm:$0xff]
        %v851 = vld [vmem:[%s707 + $0x348] sm:$0xff]
        %v852 = vld [vmem:[%s707 + $0x350] sm:$0xff]
        %v853 = vld [vmem:[%s707 + $0x358] sm:$0xff]
        %v854 = vld [vmem:[%s707 + $0x360] sm:$0xff]
        %v855 = vld [vmem:[%s707 + $0x368] sm:$0xff]
        %v856 = vld [vmem:[%s707 + $0x370] sm:$0xff]
        %v857 = vld [vmem:[%s707 + $0x378] sm:$0xff]
        %v858 = vld [vmem:[%s707 + $0x380] sm:$0xff]
        %v859 = vld [vmem:[%s707 + $0x388] sm:$0xff]
        %v860 = vld [vmem:[%s707 + $0x390] sm:$0xff]
        %v861 = vld [vmem:[%s707 + $0x398] sm:$0xff]
        %v862 = vld [vmem:[%s707 + $0x3a0] sm:$0xff]
        %v863 = vld [vmem:[%s707 + $0x3a8] sm:$0xff]
        %v864 = vld [vmem:[%s707 + $0x3b0] sm:$0xff]
        %v865 = vld [vmem:[%s707 + $0x3b8] sm:$0xff]
        %v866 = vld [vmem:[%s707 + $0x3c0] sm:$0xff]
        %v867 = vld [vmem:[%s707 + $0x3c8] sm:$0xff]
        %v868 = vld [vmem:[%s707 + $0x3d0] sm:$0xff]
        %v869 = vld [vmem:[%s707 + $0x3d8] sm:$0xff]
        %v870 = vld [vmem:[%s707 + $0x3e0] sm:$0xff]
        %v871 = vld [vmem:[%s707 + $0x3e8] sm:$0xff]
        %v872 = vld [vmem:[%s707 + $0x3f0] sm:$0xff]
        %v873 = vld [vmem:[%s707 + $0x3f8] sm:$0xff]
        %vm874 = vcmask 31744
        %v875 = vsel %vm874, %v746, 0.0
        %v876 = vsel %vm874, %v747, 0.0
        %v877 = vadd.f32 %v875, %v876
        %v878 = vsel %vm874, %v748, 0.0
        %v879 = vadd.f32 %v877, %v878
        %v880 = vsel %vm874, %v749, 0.0
        %v881 = vadd.f32 %v879, %v880
        %v882 = vsel %vm874, %v750, 0.0
        %v883 = vadd.f32 %v881, %v882
        %v884 = vsel %vm874, %v751, 0.0
        %v885 = vadd.f32 %v883, %v884
        %v886 = vsel %vm874, %v752, 0.0
        %v887 = vadd.f32 %v885, %v886
        %v888 = vsel %vm874, %v753, 0.0
        %v889 = vadd.f32 %v887, %v888
        %v890 = vsel %vm874, %v754, 0.0
        %v891 = vadd.f32 %v889, %v890
        %v892 = vsel %vm874, %v755, 0.0
        %v893 = vadd.f32 %v891, %v892
        %v894 = vsel %vm874, %v756, 0.0
        %v895 = vadd.f32 %v893, %v894
        %v896 = vsel %vm874, %v757, 0.0
        %v897 = vadd.f32 %v895, %v896
        %v898 = vsel %vm874, %v758, 0.0
        %v899 = vadd.f32 %v897, %v898
        %v900 = vsel %vm874, %v759, 0.0
        %v901 = vadd.f32 %v899, %v900
        %v902 = vsel %vm874, %v760, 0.0
        %v903 = vadd.f32 %v901, %v902
        %v904 = vsel %vm874, %v761, 0.0
        %v905 = vadd.f32 %v903, %v904
        %v906 = vsel %vm874, %v762, 0.0
        %v907 = vsel %vm874, %v763, 0.0
        %v908 = vadd.f32 %v906, %v907
        %v909 = vsel %vm874, %v764, 0.0
        %v910 = vadd.f32 %v908, %v909
        %v911 = vsel %vm874, %v765, 0.0
        %v912 = vadd.f32 %v910, %v911
        %v913 = vsel %vm874, %v766, 0.0
        %v914 = vadd.f32 %v912, %v913
        %v915 = vsel %vm874, %v767, 0.0
        %v916 = vadd.f32 %v914, %v915
        %v917 = vsel %vm874, %v768, 0.0
        %v918 = vadd.f32 %v916, %v917
        %v919 = vsel %vm874, %v769, 0.0
        %v920 = vadd.f32 %v918, %v919
        %v921 = vsel %vm874, %v770, 0.0
        %v922 = vadd.f32 %v920, %v921
        %v923 = vsel %vm874, %v771, 0.0
        %v924 = vadd.f32 %v922, %v923
        %v925 = vsel %vm874, %v772, 0.0
        %v926 = vadd.f32 %v924, %v925
        %v927 = vsel %vm874, %v773, 0.0
        %v928 = vadd.f32 %v926, %v927
        %v929 = vsel %vm874, %v774, 0.0
        %v930 = vadd.f32 %v928, %v929
        %v931 = vsel %vm874, %v775, 0.0
        %v932 = vadd.f32 %v930, %v931
        %v933 = vsel %vm874, %v776, 0.0
        %v934 = vadd.f32 %v932, %v933
        %v935 = vsel %vm874, %v777, 0.0
        %v936 = vadd.f32 %v934, %v935
        %v937 = vsel %vm874, %v778, 0.0
        %v938 = vsel %vm874, %v779, 0.0
        %v939 = vadd.f32 %v937, %v938
        %v940 = vsel %vm874, %v780, 0.0
        %v941 = vadd.f32 %v939, %v940
        %v942 = vsel %vm874, %v781, 0.0
        %v943 = vadd.f32 %v941, %v942
        %v944 = vsel %vm874, %v782, 0.0
        %v945 = vadd.f32 %v943, %v944
        %v946 = vsel %vm874, %v783, 0.0
        %v947 = vadd.f32 %v945, %v946
        %v948 = vsel %vm874, %v784, 0.0
        %v949 = vadd.f32 %v947, %v948
        %v950 = vsel %vm874, %v785, 0.0
        %v951 = vadd.f32 %v949, %v950
        %v952 = vsel %vm874, %v786, 0.0
        %v953 = vadd.f32 %v951, %v952
        %v954 = vsel %vm874, %v787, 0.0
        %v955 = vadd.f32 %v953, %v954
        %v956 = vsel %vm874, %v788, 0.0
        %v957 = vadd.f32 %v955, %v956
        %v958 = vsel %vm874, %v789, 0.0
        %v959 = vadd.f32 %v957, %v958
        %v960 = vsel %vm874, %v790, 0.0
        %v961 = vadd.f32 %v959, %v960
        %v962 = vsel %vm874, %v791, 0.0
        %v963 = vadd.f32 %v961, %v962
        %v964 = vsel %vm874, %v792, 0.0
        %v965 = vadd.f32 %v963, %v964
        %v966 = vsel %vm874, %v793, 0.0
        %v967 = vadd.f32 %v965, %v966
        %v968 = vsel %vm874, %v794, 0.0
        %v969 = vsel %vm874, %v795, 0.0
        %v970 = vadd.f32 %v968, %v969
        %v971 = vsel %vm874, %v796, 0.0
        %v972 = vadd.f32 %v970, %v971
        %v973 = vsel %vm874, %v797, 0.0
        %v974 = vadd.f32 %v972, %v973
        %v975 = vsel %vm874, %v798, 0.0
        %v976 = vadd.f32 %v974, %v975
        %v977 = vsel %vm874, %v799, 0.0
        %v978 = vadd.f32 %v976, %v977
        %v979 = vsel %vm874, %v800, 0.0
        %v980 = vadd.f32 %v978, %v979
        %v981 = vsel %vm874, %v801, 0.0
        %v982 = vadd.f32 %v980, %v981
        %v983 = vsel %vm874, %v802, 0.0
        %v984 = vadd.f32 %v982, %v983
        %v985 = vsel %vm874, %v803, 0.0
        %v986 = vadd.f32 %v984, %v985
        %v987 = vsel %vm874, %v804, 0.0
        %v988 = vadd.f32 %v986, %v987
        %v989 = vsel %vm874, %v805, 0.0
        %v990 = vadd.f32 %v988, %v989
        %v991 = vsel %vm874, %v806, 0.0
        %v992 = vadd.f32 %v990, %v991
        %v993 = vsel %vm874, %v807, 0.0
        %v994 = vadd.f32 %v992, %v993
        %v995 = vsel %vm874, %v808, 0.0
        %v996 = vadd.f32 %v994, %v995
        %v997 = vsel %vm874, %v809, 0.0
        %v998 = vadd.f32 %v996, %v997
        %v999 = vsel %vm874, %v810, 0.0
        %v1000 = vsel %vm874, %v811, 0.0
        %v1001 = vadd.f32 %v999, %v1000
        %v1002 = vsel %vm874, %v812, 0.0
        %v1003 = vadd.f32 %v1001, %v1002
        %v1004 = vsel %vm874, %v813, 0.0
        %v1005 = vadd.f32 %v1003, %v1004
        %v1006 = vsel %vm874, %v814, 0.0
        %v1007 = vadd.f32 %v1005, %v1006
        %v1008 = vsel %vm874, %v815, 0.0
        %v1009 = vadd.f32 %v1007, %v1008
        %v1010 = vsel %vm874, %v816, 0.0
        %v1011 = vadd.f32 %v1009, %v1010
        %v1012 = vsel %vm874, %v817, 0.0
        %v1013 = vadd.f32 %v1011, %v1012
        %v1014 = vsel %vm874, %v818, 0.0
        %v1015 = vadd.f32 %v1013, %v1014
        %v1016 = vsel %vm874, %v819, 0.0
        %v1017 = vadd.f32 %v1015, %v1016
        %v1018 = vsel %vm874, %v820, 0.0
        %v1019 = vadd.f32 %v1017, %v1018
        %v1020 = vsel %vm874, %v821, 0.0
        %v1021 = vadd.f32 %v1019, %v1020
        %v1022 = vsel %vm874, %v822, 0.0
        %v1023 = vadd.f32 %v1021, %v1022
        %v1024 = vsel %vm874, %v823, 0.0
        %v1025 = vadd.f32 %v1023, %v1024
        %v1026 = vsel %vm874, %v824, 0.0
        %v1027 = vadd.f32 %v1025, %v1026
        %v1028 = vsel %vm874, %v825, 0.0
        %v1029 = vadd.f32 %v1027, %v1028
        %v1030 = vsel %vm874, %v826, 0.0
        %v1031 = vsel %vm874, %v827, 0.0
        %v1032 = vadd.f32 %v1030, %v1031
        %v1033 = vsel %vm874, %v828, 0.0
        %v1034 = vadd.f32 %v1032, %v1033
        %v1035 = vsel %vm874, %v829, 0.0
        %v1036 = vadd.f32 %v1034, %v1035
        %v1037 = vsel %vm874, %v830, 0.0
        %v1038 = vadd.f32 %v1036, %v1037
        %v1039 = vsel %vm874, %v831, 0.0
        %v1040 = vadd.f32 %v1038, %v1039
        %v1041 = vsel %vm874, %v832, 0.0
        %v1042 = vadd.f32 %v1040, %v1041
        %v1043 = vsel %vm874, %v833, 0.0
        %v1044 = vadd.f32 %v1042, %v1043
        %v1045 = vsel %vm874, %v834, 0.0
        %v1046 = vadd.f32 %v1044, %v1045
        %v1047 = vsel %vm874, %v835, 0.0
        %v1048 = vadd.f32 %v1046, %v1047
        %v1049 = vsel %vm874, %v836, 0.0
        %v1050 = vadd.f32 %v1048, %v1049
        %v1051 = vsel %vm874, %v837, 0.0
        %v1052 = vadd.f32 %v1050, %v1051
        %v1053 = vsel %vm874, %v838, 0.0
        %v1054 = vadd.f32 %v1052, %v1053
        %v1055 = vsel %vm874, %v839, 0.0
        %v1056 = vadd.f32 %v1054, %v1055
        %v1057 = vsel %vm874, %v840, 0.0
        %v1058 = vadd.f32 %v1056, %v1057
        %v1059 = vsel %vm874, %v841, 0.0
        %v1060 = vadd.f32 %v1058, %v1059
        %v1061 = vsel %vm874, %v842, 0.0
        %v1062 = vsel %vm874, %v843, 0.0
        %v1063 = vadd.f32 %v1061, %v1062
        %v1064 = vsel %vm874, %v844, 0.0
        %v1065 = vadd.f32 %v1063, %v1064
        %v1066 = vsel %vm874, %v845, 0.0
        %v1067 = vadd.f32 %v1065, %v1066
        %v1068 = vsel %vm874, %v846, 0.0
        %v1069 = vadd.f32 %v1067, %v1068
        %v1070 = vsel %vm874, %v847, 0.0
        %v1071 = vadd.f32 %v1069, %v1070
        %v1072 = vsel %vm874, %v848, 0.0
        %v1073 = vadd.f32 %v1071, %v1072
        %v1074 = vsel %vm874, %v849, 0.0
        %v1075 = vadd.f32 %v1073, %v1074
        %v1076 = vsel %vm874, %v850, 0.0
        %v1077 = vadd.f32 %v1075, %v1076
        %v1078 = vsel %vm874, %v851, 0.0
        %v1079 = vadd.f32 %v1077, %v1078
        %v1080 = vsel %vm874, %v852, 0.0
        %v1081 = vadd.f32 %v1079, %v1080
        %v1082 = vsel %vm874, %v853, 0.0
        %v1083 = vadd.f32 %v1081, %v1082
        %v1084 = vsel %vm874, %v854, 0.0
        %v1085 = vadd.f32 %v1083, %v1084
        %v1086 = vsel %vm874, %v855, 0.0
        %v1087 = vadd.f32 %v1085, %v1086
        %v1088 = vsel %vm874, %v856, 0.0
        %v1089 = vadd.f32 %v1087, %v1088
        %v1090 = vsel %vm874, %v857, 0.0
        %v1091 = vadd.f32 %v1089, %v1090
        %v1092 = vsel %vm874, %v858, 0.0
        %v1093 = vsel %vm874, %v859, 0.0
        %v1094 = vadd.f32 %v1092, %v1093
        %v1095 = vsel %vm874, %v860, 0.0
        %v1096 = vadd.f32 %v1094, %v1095
        %v1097 = vsel %vm874, %v861, 0.0
        %v1098 = vadd.f32 %v1096, %v1097
        %v1099 = vsel %vm874, %v862, 0.0
        %v1100 = vadd.f32 %v1098, %v1099
        %v1101 = vsel %vm874, %v863, 0.0
        %v1102 = vadd.f32 %v1100, %v1101
        %v1103 = vsel %vm874, %v864, 0.0
        %v1104 = vadd.f32 %v1102, %v1103
        %v1105 = vsel %vm874, %v865, 0.0
        %v1106 = vadd.f32 %v1104, %v1105
        %v1107 = vsel %vm874, %v866, 0.0
        %v1108 = vadd.f32 %v1106, %v1107
        %v1109 = vsel %vm874, %v867, 0.0
        %v1110 = vadd.f32 %v1108, %v1109
        %v1111 = vsel %vm874, %v868, 0.0
        %v1112 = vadd.f32 %v1110, %v1111
        %v1113 = vsel %vm874, %v869, 0.0
        %v1114 = vadd.f32 %v1112, %v1113
        %v1115 = vsel %vm874, %v870, 0.0
        %v1116 = vadd.f32 %v1114, %v1115
        %v1117 = vsel %vm874, %v871, 0.0
        %v1118 = vadd.f32 %v1116, %v1117
        %v1119 = vsel %vm874, %v872, 0.0
        %v1120 = vadd.f32 %v1118, %v1119
        %v1121 = vsel %vm874, %v873, 0.0
        %v1122 = vadd.f32 %v1120, %v1121
        %v1123 = vadd.f32 %v738, %v905
        %v1124 = vadd.f32 %v739, %v936
        %v1125 = vadd.f32 %v740, %v967
        %v1126 = vadd.f32 %v741, %v998
        %v1127 = vadd.f32 %v742, %v1029
        %v1128 = vadd.f32 %v743, %v1060
        %v1129 = vadd.f32 %v744, %v1091
        %v1130 = vadd.f32 %v745, %v1122
        %1131 = vst.msk [vmem:[#allocation2] sm:$0xff] %vm874, %v1123
        %1132 = vst.msk [vmem:[#allocation2 + $0x8] sm:$0xff] %vm874, %v1124
        %1133 = vst.msk [vmem:[#allocation2 + $0x10] sm:$0xff] %vm874, %v1125
        %1134 = vst.msk [vmem:[#allocation2 + $0x18] sm:$0xff] %vm874, %v1126
        %1135 = vst.msk [vmem:[#allocation2 + $0x20] sm:$0xff] %vm874, %v1127
        %1136 = vst.msk [vmem:[#allocation2 + $0x28] sm:$0xff] %vm874, %v1128
        %1137 = vst.msk [vmem:[#allocation2 + $0x30] sm:$0xff] %vm874, %v1129
        %1138 = vst.msk [vmem:[#allocation2 + $0x38] sm:$0xff] %vm874, %v1130
        %p1139 = scmp.eq.s32.totalorder %s20, 1
        // Predicated region
        $region75: #{tpu_custom_call.1} parent=65 // pred_check
          %p1140 = pneg %p1139
        $region76: #{tpu_custom_call.1} parent=65 // pred_check_branch
          %1142 = sbr.rel (%p1140) target = $region78
        $region77: #{tpu_custom_call.1} parent=65 // pred_region
          %v1143 = vld [vmem:[#allocation2] sm:$0xff]
          %v1144 = vld [vmem:[#allocation2 + $0x8] sm:$0xff]
          %v1145 = vld [vmem:[#allocation2 + $0x10] sm:$0xff]
          %v1146 = vld [vmem:[#allocation2 + $0x18] sm:$0xff]
          %v1147 = vld [vmem:[#allocation2 + $0x20] sm:$0xff]
          %v1148 = vld [vmem:[#allocation2 + $0x28] sm:$0xff]
          %v1149 = vld [vmem:[#allocation2 + $0x30] sm:$0xff]
          %v1150 = vld [vmem:[#allocation2 + $0x38] sm:$0xff]
          %v1151 = vsel %vm874, %v1143, 0.0
          %v1152 = vrot.slane %v1151, 4
          %v1153 = vadd.f32 %v1151, %v1152
          %v1154 = vrot.slane %v1153, 2
          %v1155 = vadd.f32 %v1153, %v1154
          %v1156 = vrot.slane %v1155, 1
          %v1157 = vadd.f32 %v1155, %v1156
          %v1158 = vsel %vm874, %v1144, 0.0
          %v1159 = vrot.slane %v1158, 4
          %v1160 = vadd.f32 %v1158, %v1159
          %v1161 = vrot.slane %v1160, 2
          %v1162 = vadd.f32 %v1160, %v1161
          %v1163 = vrot.slane %v1162, 1
          %v1164 = vadd.f32 %v1162, %v1163
          %v1165 = vsel %vm874, %v1145, 0.0
          %v1166 = vrot.slane %v1165, 4
          %v1167 = vadd.f32 %v1165, %v1166
          %v1168 = vrot.slane %v1167, 2
          %v1169 = vadd.f32 %v1167, %v1168
          %v1170 = vrot.slane %v1169, 1
          %v1171 = vadd.f32 %v1169, %v1170
          %v1172 = vsel %vm874, %v1146, 0.0
          %v1173 = vrot.slane %v1172, 4
          %v1174 = vadd.f32 %v1172, %v1173
          %v1175 = vrot.slane %v1174, 2
          %v1176 = vadd.f32 %v1174, %v1175
          %v1177 = vrot.slane %v1176, 1
          %v1178 = vadd.f32 %v1176, %v1177
          %v1179 = vsel %vm874, %v1147, 0.0
          %v1180 = vrot.slane %v1179, 4
          %v1181 = vadd.f32 %v1179, %v1180
          %v1182 = vrot.slane %v1181, 2
          %v1183 = vadd.f32 %v1181, %v1182
          %v1184 = vrot.slane %v1183, 1
          %v1185 = vadd.f32 %v1183, %v1184
          %v1186 = vsel %vm874, %v1148, 0.0
          %v1187 = vrot.slane %v1186, 4
          %v1188 = vadd.f32 %v1186, %v1187
          %v1189 = vrot.slane %v1188, 2
          %v1190 = vadd.f32 %v1188, %v1189
          %v1191 = vrot.slane %v1190, 1
          %v1192 = vadd.f32 %v1190, %v1191
          %v1193 = vsel %vm874, %v1149, 0.0
          %v1194 = vrot.slane %v1193, 4
          %v1195 = vadd.f32 %v1193, %v1194
          %v1196 = vrot.slane %v1195, 2
          %v1197 = vadd.f32 %v1195, %v1196
          %v1198 = vrot.slane %v1197, 1
          %v1199 = vadd.f32 %v1197, %v1198
          %v1200 = vsel %vm874, %v1150, 0.0
          %v1201 = vrot.slane %v1200, 4
          %v1202 = vadd.f32 %v1200, %v1201
          %v1203 = vrot.slane %v1202, 2
          %v1204 = vadd.f32 %v1202, %v1203
          %v1205 = vrot.slane %v1204, 1
          %v1206 = vadd.f32 %v1204, %v1205
          %v1207 = vmul.f32 %v1157, 0.00390625
          %v1208 = vmul.f32 %v1164, 0.00390625
          %v1209 = vmul.f32 %v1171, 0.00390625
          %v1210 = vmul.f32 %v1178, 0.00390625
          %v1211 = vmul.f32 %v1185, 0.00390625
          %v1212 = vmul.f32 %v1192, 0.00390625
          %v1213 = vmul.f32 %v1199, 0.00390625
          %v1214 = vmul.f32 %v1206, 0.00390625
          %v1215 = vld [vmem:[%s1] sm:$0xf]
          %v1216 = vld [vmem:[%s2] sm:$0x1]
          %v1218 = vperm.slane %v1216, 0
          %vm1228 = vcmask 1041409
          %v1229 = vsel %vm1228, %v1208, %v1207
          %vm1230 = vcmask 1042434
          %v1231 = vsel %vm1230, %v1209, %v1229
          %vm1232 = vcmask 1043459
          %v1233 = vsel %vm1232, %v1210, %v1231
          %vm1234 = vcmask 1044484
          %v1235 = vsel %vm1234, %v1211, %v1233
          %vm1236 = vcmask 1045509
          %v1237 = vsel %vm1236, %v1212, %v1235
          %vm1238 = vcmask 1046534
          %v1239 = vsel %vm1238, %v1213, %v1237
          %vm1240 = vcmask 1047559
          %v1241 = vsel %vm1240, %v1214, %v1239
          %v1242 = vsel %vm874, %v1241, 0
          %vm1244 = vcmask 1043456
          %v1246 = vsel %vm1244, %v1215, 0
          %1248 = vmatpush.msra.mxu0 0.0
          %1249 = vmatpush.msra.mxu0 0.0
          %1250 = vmatpush.msra.mxu0 0.0
          %1251 = vmatpush.msra.mxu0 0.0
          %1252 = vmatpush.msra.mxu0 0.0
          %1253 = vmatpush.msra.mxu0 0.0
          %1254 = vmatpush.msra.mxu0 0.0
          %1255 = vmatpush.msra.mxu0 0.0
          %1256 = vmatpush.msra.mxu0 0.0
          %1257 = vmatpush.msra.mxu0 0.0
          %1258 = vmatpush.msra.mxu0 0.0
          %1259 = vmatpush.msra.mxu0 0.0
          %1260 = vmatpush.msra.mxu0 0.0
          %1261 = vmatpush.msra.mxu0 0.0
          %1262 = vmatpush.msra.mxu0 0.0
          %1263 = vmatpush.msra.mxu0 %v1246
          %1264 = vmatmul.f32.gmra.mxu0 %v1242
          %v1265 = vpop.f32.mrf.mxu0
          %v1266 = vadd.f32 %v1218, %v1265
          %1267 = vdwg.mxu0
          %1268 = vst [vmem:[#allocation4] sm:$0xff] %v1266
        $region78: #{tpu_custom_call.1} parent=65 // pred_fallthru
          _
        // Predicated region
        $region79: #{tpu_custom_call.1} parent=65 // pred_check
          %p1269 = pneg %p115
        $region80: #{tpu_custom_call.1} parent=65 // pred_check_branch
          %1271 = sbr.rel (%p1269) target = $region82
        $region81: #{tpu_custom_call.1} parent=65 // pred_region
          %1273 = vsyncadd [#allocation5], 0
          %s1274 = smul.addr %s19, 8
          %s1275 = scalar_lea.hbm %s3, %s1274
          %s1277 = sshll.u32 [#allocation4], 4
          %s1278 = int_to_ptr.vmem [resolvable:$true] %s1277
          %s1279 = sshll.u32 %s1275, 4
          %s1280 = int_to_ptr.hbm [resolvable:$true] %s1279
          %1282 = dma.vmem_to_hbm [thread:$0]  %s1278, 128, %s1280, [#allocation5]
        $region82: #{tpu_custom_call.1} parent=65 // pred_fallthru
          _
        // Predicated region
        $region83: #{tpu_custom_call.1} parent=65 // pred_check
          %p1283 = pneg %p115
        $region84: #{tpu_custom_call.1} parent=65 // pred_check_branch
          %1285 = sbr.rel (%p1283) target = $region86
        $region85: #{tpu_custom_call.1} parent=65 // pred_region
          %1287 = dma.done [#allocation5], 128
        $region86: #{tpu_custom_call.1} parent=65 // pred_fallthru
          _
      $region66: #{tpu_custom_call.1} parent=5 // pred_fallthru
        _
      %p1288 = scmp.le.s32.totalorder 2, %s10
      // Predicated region
      $region87: #{tpu_custom_call.1} parent=5 // pred_check
        %p1289 = pneg %p1288
      $region88: #{tpu_custom_call.1} parent=5 // pred_check_branch
        %1291 = sbr.rel (%p1289) target = $region90
      $region89: #{tpu_custom_call.1} parent=5 // pred_region
        %s1292 = ssub.s32 %s10, 2
      $region90: #{tpu_custom_call.1} parent=5 // pred_fallthru
        _
    $region6: #{tpu_custom_call.1} parent=1 // loop_footer
      %s14 = sadd.s32 1, %s10
    $region7: #{tpu_custom_call.1} parent=1 // loop_footer_branch
      %9 = sbr.rel target = $region3
    $region8: #{tpu_custom_call.1} parent=1 // loop_exit
      _
    %1293 = vsyncpa [#allocation5], 1
    %s1294 = scalar_lea.sflag [#allocation5], 1
    %1295 = vsyncpa %s1294, 1

</llo_original>
